<compile_context>
chip_gen: v7x
topology: tpu7x:2x2x1
jax: 0.10.0
libtpu: 0.0.40
codegen_flags: <defaults>
</compile_context>

<pallas_src>
import functools

import jax
import jax.numpy as jnp
from jax.experimental import pallas as pl
from jax.experimental.pallas import tpu as pltpu


# Large finite negative instead of -inf: identical softmax result for partially
# masked rows (exp underflows to 0) but no NaN if a query row is fully masked.
_MASK_VALUE = -1e30


def _round_up(x, m):
    return ((x + m - 1) // m) * m


@functools.lru_cache(maxsize=1)
def _vmem_limit_bytes():
    cap = 64 * 1024 * 1024                 # conservative fallback, safe on all gens
    try:
        cap = int(pltpu.get_tpu_info().vmem_capacity_bytes)
    except Exception:
        pass
    return (cap * 3) // 4                  # ~96 MiB on v5e/v6e, ~48 MiB on v7x


def _pick_row_tile(m):
    """Row tile: one 8-aligned tile for small M (no padding), 256 otherwise."""
    tm = _round_up(m, 8) if m < 512 else 256
    return tm, _round_up(m, tm)


def _pick_col_tile(d, target):
    """Largest multiple of 128 that divides d and is <= target; else full d."""
    cands = [t for t in range(128, d + 1, 128) if d % t == 0 and t <= target]
    return max(cands) if cands else d


# --------------------------- fused K/V/Q projection ---------------------------

def _qkv_proj_kernel(xk_ref, xv_ref, xq_ref, w_ref, b_ref, o_ref, acc_ref):
    kk = pl.program_id(2)

    @pl.when(kk == 0)
    def _():
        acc_ref[...] = jnp.zeros_like(acc_ref)

    cdt = w_ref.dtype          # bf16 MXU feed (f32 when running the parity path)
    acc_ref[0] += jnp.dot(xk_ref[...].astype(cdt), w_ref[0],
                          preferred_element_type=jnp.float32)
    acc_ref[1] += jnp.dot(xv_ref[...].astype(cdt), w_ref[1],
                          preferred_element_type=jnp.float32)
    acc_ref[2] += jnp.dot(xq_ref[...].astype(cdt), w_ref[2],
                          preferred_element_type=jnp.float32)

    @pl.when(kk == pl.num_programs(2) - 1)
    def _():
        o_ref[...] = (acc_ref[...] + b_ref[...]).astype(o_ref.dtype)


def qkv_projections(key, value, query, w_kvq, b_kvq):
    """K/V/Q projections in one pallas_call (no activation stacking in HBM).

    key/value: (B, Sk, D); query: (B, Sq, D); w_kvq: (3, D, D) [k, v, q];
    b_kvq: (3, 1, D).  Returns (k, v, q) with dtype == w_kvq.dtype.
    """
    B, s_k, D = key.shape
    s_q = query.shape[1]
    m_k, m_q = B * s_k, B * s_q
    tm, m_pad = _pick_row_tile(max(m_k, m_q))
    tk = _pick_col_tile(D, 512)            # contraction tile (divides D)
    tn = _pick_col_tile(D, 512)            # output-column tile (divides D)

    def prep(x):                           # flatten; pad rows only when needed
        x2 = x.reshape(-1, D)
        if x2.shape[0] != m_pad:
            x2 = jnp.pad(x2, ((0, m_pad - x2.shape[0]), (0, 0)))
        return x2

    out = pl.pallas_call(
        _qkv_proj_kernel,
        out_shape=jax.ShapeDtypeStruct((3, m_pad, D), w_kvq.dtype),
        grid=(m_pad // tm, D // tn, D // tk),
        in_specs=[
            pl.BlockSpec((tm, tk), lambda i, j, kk: (i, kk)),
            pl.BlockSpec((tm, tk), lambda i, j, kk: (i, kk)),
            pl.BlockSpec((tm, tk), lambda i, j, kk: (i, kk)),
            pl.BlockSpec((3, tk, tn), lambda i, j, kk: (0, kk, j)),
            pl.BlockSpec((3, 1, tn), lambda i, j, kk: (0, 0, j)),
        ],
        out_specs=pl.BlockSpec((3, tm, tn), lambda i, j, kk: (0, i, j)),
        scratch_shapes=[pltpu.VMEM((3, tm, tn), jnp.float32)],
        compiler_params=pltpu.CompilerParams(
            dimension_semantics=("parallel", "parallel", "arbitrary"),
            vmem_limit_bytes=_vmem_limit_bytes()),
    )(prep(key), prep(value), prep(query), w_kvq, b_kvq)

    k_proj = out[0, :m_k].reshape(B, s_k, D)
    v_proj = out[1, :m_k].reshape(B, s_k, D)
    q_proj = out[2, :m_q].reshape(B, s_q, D)
    return k_proj, v_proj, q_proj


# ------------------------ scaled dot-product attention ------------------------

def _sdpa_kernel(q_ref, k_ref, v_ref, bias_ref, ctx_ref, *attn_out,
                 scale, batch):
    gb, sq, dph = q_ref.shape
    sk = k_ref.shape[1]
    gh = gb // batch

    # q @ k^T without a materialized transpose: contract the last dims (MXU,
    # bf16 operands, f32 accumulation).
    scores = jax.lax.dot_general(
        q_ref[...], k_ref[...], (((2,), (2,)), ((0,), (0,))),
        preferred_element_type=jnp.float32) * scale            # (gb, sq, sk)

    # Slice j of this group pairs with mask[j % batch] (== torch repeat(H,1,1)).
    # The (batch, sq, sk) additive bias stays VMEM-resident (constant index_map);
    # the H-fold replicated mask is never materialized in HBM.
    bias = jnp.broadcast_to(bias_ref[...][None],
                            (gh, batch, sq, sk)).reshape(gb, sq, sk)
    scores = scores + bias

    mx = jnp.max(scores, axis=-1, keepdims=True)
    e = jnp.exp(scores - mx)
    denom = jnp.sum(e, axis=-1, keepdims=True)
    attn = e * pl.reciprocal(denom, approx=True)               # divide on the EUP

    ctx = jax.lax.dot_general(
        attn.astype(v_ref.dtype), v_ref[...], (((2,), (1,)), ((0,), (0,))),
        preferred_element_type=jnp.float32)                    # (gb, sq, dph)

    ctx_ref[...] = ctx.astype(ctx_ref.dtype)
    if attn_out:                                               # optional output
        attn_out[0][...] = attn.astype(attn_out[0].dtype)


def _pick_group_heads(H, B, sq, sk, dph, act_bytes, write_attn):
    """Heads per grid step: VMEM-aware and keeps >= 2 grid steps when possible."""
    budget = (_vmem_limit_bytes() * 3) // 5    # headroom for spills/intermediates

    def step_bytes(gh):
        gb = gh * B
        b = 2 * gb * (sq + 2 * sk) * dph * act_bytes   # q,k,v blocks (double-buffered)
        b += 2 * gb * sq * dph * act_bytes             # ctx out (double-buffered)
        if write_attn:
            b += 2 * gb * sq * sk * act_bytes          # attn out (double-buffered)
        b += 3 * gb * sq * sk * 4                      # scores/exp/probs (f32, live)
        b += B * sq * sk * 4                           # resident mask bias
        return b

    gh = 1
    for cand in range(1, H + 1):
        if H % cand:
            continue
        if H > 1 and H // cand < 2:        # >= 2 grid steps: v7x megacore + pipelining
            continue
        if step_bytes(cand) > budget:
            continue
        gh = cand
    return gh


def scaled_dot_product_attention(q, k, v, mask_bias, scale, *, batch,
                                 return_attention=True):
    """q/k/v: (B*H, S, dph); mask_bias: (B, Sq, Sk) additive f32 bias."""
    BH, sq, dph = q.shape
    sk = k.shape[1]
    H = BH // batch
    gh = _pick_group_heads(H, batch, sq, sk, dph, q.dtype.itemsize,
                           return_attention)
    gb = gh * batch

    out_shape = [jax.ShapeDtypeStruct((BH, sq, dph), q.dtype)]
    out_specs = [pl.BlockSpec((gb, sq, dph), lambda g: (g, 0, 0))]
    if return_attention:
        out_shape.append(jax.ShapeDtypeStruct((BH, sq, sk), q.dtype))
        out_specs.append(pl.BlockSpec((gb, sq, sk), lambda g: (g, 0, 0)))

    kern = functools.partial(_sdpa_kernel, scale=scale, batch=batch)
    outs = pl.pallas_call(
        kern,
        out_shape=tuple(out_shape),
        grid=(BH // gb,),
        in_specs=[
            pl.BlockSpec((gb, sq, dph), lambda g: (g, 0, 0)),
            pl.BlockSpec((gb, sk, dph), lambda g: (g, 0, 0)),
            pl.BlockSpec((gb, sk, dph), lambda g: (g, 0, 0)),
            pl.BlockSpec((batch, sq, sk), lambda g: (0, 0, 0)),  # same tile every step
        ],
        out_specs=tuple(out_specs),
        compiler_params=pltpu.CompilerParams(
            dimension_semantics=("parallel",),
            vmem_limit_bytes=_vmem_limit_bytes()),
    )(q, k, v, mask_bias)

    if return_attention:
        ctx, attn = outs
        return ctx, attn
    ctx = outs[0] if isinstance(outs, (tuple, list)) else outs
    return ctx, None


# ---------------- fused output projection + residual + LayerNorm ----------------

def _out_ln_kernel(x_ref, w_ref, b_ref, r_ref, g_ref, bt_ref, o_ref, acc_ref, *, eps):
    kk = pl.program_id(1)

    @pl.when(kk == 0)
    def _():
        acc_ref[...] = jnp.zeros_like(acc_ref)

    acc_ref[...] += jnp.dot(x_ref[...].astype(w_ref.dtype), w_ref[...],
                            preferred_element_type=jnp.float32)

    @pl.when(kk == pl.num_programs(1) - 1)
    def _():
        y = acc_ref[...] + b_ref[...] + r_ref[...]            # proj bias + residual
        mu = jnp.mean(y, axis=-1, keepdims=True)
        var = jnp.mean(jnp.square(y - mu), axis=-1, keepdims=True)
        o_ref[...] = ((y - mu) * jax.lax.rsqrt(var + eps)
                      * g_ref[...] + bt_ref[...]).astype(o_ref.dtype)


def out_proj_residual_layernorm(context, residual, wo, bo, gamma, beta, *, eps=1e-5):
    """LayerNorm(residual + context @ wo + bo); context/residual: (M, D)."""
    M, D = context.shape
    tm, m_pad = _pick_row_tile(M)
    if D >= 4096:                   # bound the full-D blocks on v7x (64 MiB VMEM)
        tm = min(tm, 128)
        m_pad = _round_up(M, tm)
    tk = _pick_col_tile(D, 512)

    if m_pad != M:                  # static check; no-op pad avoided entirely
        context = jnp.pad(context, ((0, m_pad - M), (0, 0)))
        residual = jnp.pad(residual, ((0, m_pad - M), (0, 0)))

    out = pl.pallas_call(
        functools.partial(_out_ln_kernel, eps=eps),
        out_shape=jax.ShapeDtypeStruct((m_pad, D), jnp.float32),
        grid=(m_pad // tm, D // tk),
        in_specs=[
            pl.BlockSpec((tm, tk), lambda i, kk: (i, kk)),
            pl.BlockSpec((tk, D), lambda i, kk: (kk, 0)),
            pl.BlockSpec((1, D), lambda i, kk: (0, 0)),
            pl.BlockSpec((tm, D), lambda i, kk: (i, 0)),       # fetched once per i
            pl.BlockSpec((1, D), lambda i, kk: (0, 0)),
            pl.BlockSpec((1, D), lambda i, kk: (0, 0)),
        ],
        out_specs=pl.BlockSpec((tm, D), lambda i, kk: (i, 0)),
        scratch_shapes=[pltpu.VMEM((tm, D), jnp.float32)],
        compiler_params=pltpu.CompilerParams(
            dimension_semantics=("parallel", "arbitrary"),
            vmem_limit_bytes=_vmem_limit_bytes()),
    )(context, wo, bo.reshape(1, D), residual, gamma.reshape(1, D), beta.reshape(1, D))
    return out[:M]


# ------------------------- module-equivalent wrapper ------------------------

def init_params(rng, model_dim):
    """Deterministic f32 init mimicking nn.Linear / nn.LayerNorm defaults."""
    ks = jax.random.split(rng, 8)

    def lin(k1, k2, din, dout):
        bound = 1.0 / (din ** 0.5)
        w = jax.random.uniform(k1, (din, dout), jnp.float32, -bound, bound)
        b = jax.random.uniform(k2, (dout,), jnp.float32, -bound, bound)
        return w, b

    wk, bk = lin(ks[0], ks[1], model_dim, model_dim)
    wv, bv = lin(ks[2], ks[3], model_dim, model_dim)
    wq, bq = lin(ks[4], ks[5], model_dim, model_dim)
    wo, bo = lin(ks[6], ks[7], model_dim, model_dim)
    return dict(
        wk=wk, bk=bk, wv=wv, bv=bv, wq=wq, bq=bq, wo=wo, bo=bo,
        gamma=jnp.ones((model_dim,), jnp.float32),
        beta=jnp.zeros((model_dim,), jnp.float32),
    )


def prepare_params(params, compute_dtype=jnp.bfloat16):
    """Pre-stack K/V/Q weights and pre-cast MXU operands ONCE (not per call).

    compute_dtype=jnp.bfloat16 feeds the MXU in bf16 (accumulation stays f32);
    compute_dtype=None keeps an exact-f32 path for parity validation.
    """
    wdt = jnp.float32 if compute_dtype is None else compute_dtype
    D = params["wk"].shape[0]
    return dict(
        w_kvq=jnp.stack([params["wk"], params["wv"], params["wq"]]).astype(wdt),
        b_kvq=jnp.stack([params["bk"], params["bv"], params["bq"]]
                        ).reshape(3, 1, D).astype(jnp.float32),
        wo=params["wo"].astype(wdt),
        bo=params["bo"].astype(jnp.float32),
        gamma=params["gamma"].astype(jnp.float32),
        beta=params["beta"].astype(jnp.float32),
    )


def multi_head_attention(params, key, value, query, attn_mask, *, num_heads,
                         return_attention=True):
    """Faithful port of MultiHeadAttention.forward."""
    B, _, D = key.shape
    dph = D // num_heads
    residual = query

    k, v, q = qkv_projections(key, value, query, params["w_kvq"], params["b_kvq"])

    # torch: .view(batch*heads, -1, dph) — a row-major reshape (the original
    # module does NOT transpose heads before the view); replicated exactly.
    k = k.reshape(B * num_heads, -1, dph)
    v = v.reshape(B * num_heads, -1, dph)
    q = q.reshape(B * num_heads, -1, dph)

    # torch computes scale AFTER the view: (key.size(-1) // num_heads) ** -0.5
    # with key.size(-1) == dim_per_head, i.e. (dph // num_heads) ** -0.5.
    scale = float(dph // num_heads) ** (-0.5)

    # torch: attn_mask.repeat(num_heads,1,1) pairs slice i with attn_mask[i % B];
    # converted once to a tiny additive bias — never replicated in HBM.
    mask_bias = jnp.where(attn_mask != 0, jnp.float32(_MASK_VALUE), jnp.float32(0.0))

    context, attention = scaled_dot_product_attention(
        q, k, v, mask_bias, scale, batch=B, return_attention=return_attention)

    # torch: context.view(batch, -1, dph*heads) — row-major, free.
    # TODO(synk): the SDPA ctx store is not lane-dense for dph < 128; folding
    # this reshape into the kernel needs an in-kernel cross-lane repack.
    context = context.reshape(B, -1, dph * num_heads)

    # TODO(synk): nn.Dropout(p=0.0) is an identity; no kernel needed.
    out = out_proj_residual_layernorm(
        context.reshape(-1, D), residual.reshape(-1, D),
        params["wo"], params["bo"], params["gamma"], params["beta"])
    return out.reshape(B, -1, D), attention


# ----------------------------------- main -----------------------------------

if __name__ == "__main__":
    B, S, D, H = 2, 8, 32, 4   # batch, seq, model_dim, num_heads (dph = 8)
    rng = jax.random.PRNGKey(0)
    kp, kk_, kv_, kq_ = jax.random.split(rng, 4)

    params = prepare_params(init_params(kp, D), compute_dtype=jnp.bfloat16)
    key_in = jax.random.normal(kk_, (B, S, D), jnp.float32)
    val_in = jax.random.normal(kv_, (B, S, D), jnp.float32)
    qry_in = jax.random.normal(kq_, (B, S, D), jnp.float32)
    # key-padding style mask: nonzero => masked; last 2 key positions masked
    attn_mask = jnp.zeros((B, S, S), jnp.int32).at[:, :, -2:].set(1)

    fwd = jax.jit(functools.partial(multi_head_attention, num_heads=H))
    out, attn = fwd(params, key_in, val_in, qry_in, attn_mask)
    jax.block_until_ready((out, attn))

    assert out.shape == (B, S, D), out.shape
    assert attn.shape == (B * H, S, S), attn.shape
    attn_f32 = attn.astype(jnp.float32)
    assert bool(jnp.all(jnp.isfinite(out)))
    assert bool(jnp.all(jnp.isfinite(attn_f32)))
    # softmax rows sum to ~1 (bf16 probs + approx reciprocal => loose tolerance)
    assert bool(jnp.all(jnp.abs(jnp.sum(attn_f32, axis=-1) - 1.0) < 2e-2))
    # masked key positions get ~zero attention
    assert bool(jnp.all(attn_f32[:, :, -2:] < 1e-6))
    print("KERNEL_OK")
</pallas_src>

<mosaic_0001>
module attributes {stable_mosaic.version = 11 : i64} {
  func.func @_qkv_proj_kernel(%arg0: i32, %arg1: i32, %arg2: i32, %arg3: memref<16x32xf32, #tpu.memory_space<vmem>>, %arg4: memref<16x32xf32, #tpu.memory_space<vmem>>, %arg5: memref<16x32xf32, #tpu.memory_space<vmem>>, %arg6: memref<3x32x32xbf16, #tpu.memory_space<vmem>>, %arg7: memref<3x1x32xf32, #tpu.memory_space<vmem>>, %arg8: memref<3x16x32xbf16, #tpu.memory_space<vmem>>, %arg9: memref<3x16x32xf32, #tpu.memory_space<vmem>>) attributes {dimension_semantics = [#tpu.dimension_semantics<parallel>, #tpu.dimension_semantics<parallel>, #tpu.dimension_semantics<arbitrary>], iteration_bounds = array<i64: 1, 1, 1>, scalar_prefetch = 0 : i64, scratch_operands = 1 : i64, tpu.core_type = #tpu.core_type<tc>, window_params = [{transform_indices = @transform_0, window_bounds = array<i64: 16, 32>}, {transform_indices = @transform_1, window_bounds = array<i64: 16, 32>}, {transform_indices = @transform_2, window_bounds = array<i64: 16, 32>}, {transform_indices = @transform_3, window_bounds = array<i64: 3, 32, 32>}, {transform_indices = @transform_4, window_bounds = array<i64: 3, 1, 32>}, {transform_indices = @transform_5, window_bounds = array<i64: 3, 16, 32>}]} {
    %c0_i32 = arith.constant 0 : i32
    %0 = arith.cmpi eq, %arg2, %c0_i32 : i32
    %1 = arith.extui %0 : i1 to i32
    %c0_i32_0 = arith.constant 0 : i32
    %2 = arith.cmpi ne, %1, %c0_i32_0 : i32
    scf.if %2 {
      %cst_35 = arith.constant 0.000000e+00 : f32
      %39 = vector.broadcast %cst_35 : f32 to vector<3x16x32xf32>
      %c0_36 = arith.constant 0 : index
      %c0_37 = arith.constant 0 : index
      %c0_38 = arith.constant 0 : index
      %40 = vector.load %arg9[%c0_36, %c0_37, %c0_38] : memref<3x16x32xf32, #tpu.memory_space<vmem>>, vector<3x16x32xf32>
      tpu.vector_store %arg9[%c0_36, %c0_37, %c0_38], %39 {strides = array<i32>} : memref<3x16x32xf32, #tpu.memory_space<vmem>>, vector<3x16x32xf32>,
    } else {
    }
    %c0 = arith.constant 0 : index
    %c0_1 = arith.constant 0 : index
    %c0_2 = arith.constant 0 : index
    %3 = vector.load %arg9[%c0, %c0_1, %c0_2] : memref<3x16x32xf32, #tpu.memory_space<vmem>>, vector<1x16x32xf32>
    %4 = vector.shape_cast %3 : vector<1x16x32xf32> to vector<16x32xf32>
    %c0_3 = arith.constant 0 : index
    %c0_4 = arith.constant 0 : index
    %5 = vector.load %arg3[%c0_3, %c0_4] : memref<16x32xf32, #tpu.memory_space<vmem>>, vector<16x32xf32>
    %6 = arith.truncf %5 : vector<16x32xf32> to vector<16x32xbf16>
    %c0_5 = arith.constant 0 : index
    %c0_6 = arith.constant 0 : index
    %c0_7 = arith.constant 0 : index
    %7 = vector.load %arg6[%c0_5, %c0_6, %c0_7] : memref<3x32x32xbf16, #tpu.memory_space<vmem>>, vector<1x32x32xbf16>
    %8 = vector.shape_cast %7 : vector<1x32x32xbf16> to vector<32x32xbf16>
    %cst = arith.constant dense<0.000000e+00> : vector<16x32xf32>
    %9 = tpu.matmul %6, %8, %cst {dimension_numbers = #tpu.dot_dimension_numbers<[1], [0], [0], [1], [0, 0, 1, 1], [], []>} : vector<16x32xbf16>, vector<32x32xbf16>, vector<16x32xf32> -> vector<16x32xf32>
    %10 = arith.addf %4, %9 : vector<16x32xf32>
    %c0_8 = arith.constant 0 : index
    %c0_9 = arith.constant 0 : index
    %c0_10 = arith.constant 0 : index
    %11 = vector.load %arg9[%c0_8, %c0_9, %c0_10] : memref<3x16x32xf32, #tpu.memory_space<vmem>>, vector<1x16x32xf32>
    %12 = vector.shape_cast %11 : vector<1x16x32xf32> to vector<16x32xf32>
    %13 = vector.shape_cast %10 : vector<16x32xf32> to vector<1x16x32xf32>
    tpu.vector_store %arg9[%c0_8, %c0_9, %c0_10], %13 {strides = array<i32>} : memref<3x16x32xf32, #tpu.memory_space<vmem>>, vector<1x16x32xf32>,
    %c1 = arith.constant 1 : index
    %c0_11 = arith.constant 0 : index
    %c0_12 = arith.constant 0 : index
    %14 = vector.load %arg9[%c1, %c0_11, %c0_12] : memref<3x16x32xf32, #tpu.memory_space<vmem>>, vector<1x16x32xf32>
    %15 = vector.shape_cast %14 : vector<1x16x32xf32> to vector<16x32xf32>
    %c0_13 = arith.constant 0 : index
    %c0_14 = arith.constant 0 : index
    %16 = vector.load %arg4[%c0_13, %c0_14] : memref<16x32xf32, #tpu.memory_space<vmem>>, vector<16x32xf32>
    %17 = arith.truncf %16 : vector<16x32xf32> to vector<16x32xbf16>
    %c1_15 = arith.constant 1 : index
    %c0_16 = arith.constant 0 : index
    %c0_17 = arith.constant 0 : index
    %18 = vector.load %arg6[%c1_15, %c0_16, %c0_17] : memref<3x32x32xbf16, #tpu.memory_space<vmem>>, vector<1x32x32xbf16>
    %19 = vector.shape_cast %18 : vector<1x32x32xbf16> to vector<32x32xbf16>
    %cst_18 = arith.constant dense<0.000000e+00> : vector<16x32xf32>
    %20 = tpu.matmul %17, %19, %cst_18 {dimension_numbers = #tpu.dot_dimension_numbers<[1], [0], [0], [1], [0, 0, 1, 1], [], []>} : vector<16x32xbf16>, vector<32x32xbf16>, vector<16x32xf32> -> vector<16x32xf32>
    %21 = arith.addf %15, %20 : vector<16x32xf32>
    %c1_19 = arith.constant 1 : index
    %c0_20 = arith.constant 0 : index
    %c0_21 = arith.constant 0 : index
    %22 = vector.load %arg9[%c1_19, %c0_20, %c0_21] : memref<3x16x32xf32, #tpu.memory_space<vmem>>, vector<1x16x32xf32>
    %23 = vector.shape_cast %22 : vector<1x16x32xf32> to vector<16x32xf32>
    %24 = vector.shape_cast %21 : vector<16x32xf32> to vector<1x16x32xf32>
    tpu.vector_store %arg9[%c1_19, %c0_20, %c0_21], %24 {strides = array<i32>} : memref<3x16x32xf32, #tpu.memory_space<vmem>>, vector<1x16x32xf32>,
    %c2 = arith.constant 2 : index
    %c0_22 = arith.constant 0 : index
    %c0_23 = arith.constant 0 : index
    %25 = vector.load %arg9[%c2, %c0_22, %c0_23] : memref<3x16x32xf32, #tpu.memory_space<vmem>>, vector<1x16x32xf32>
    %26 = vector.shape_cast %25 : vector<1x16x32xf32> to vector<16x32xf32>
    %c0_24 = arith.constant 0 : index
    %c0_25 = arith.constant 0 : index
    %27 = vector.load %arg5[%c0_24, %c0_25] : memref<16x32xf32, #tpu.memory_space<vmem>>, vector<16x32xf32>
    %28 = arith.truncf %27 : vector<16x32xf32> to vector<16x32xbf16>
    %c2_26 = arith.constant 2 : index
    %c0_27 = arith.constant 0 : index
    %c0_28 = arith.constant 0 : index
    %29 = vector.load %arg6[%c2_26, %c0_27, %c0_28] : memref<3x32x32xbf16, #tpu.memory_space<vmem>>, vector<1x32x32xbf16>
    %30 = vector.shape_cast %29 : vector<1x32x32xbf16> to vector<32x32xbf16>
    %cst_29 = arith.constant dense<0.000000e+00> : vector<16x32xf32>
    %31 = tpu.matmul %28, %30, %cst_29 {dimension_numbers = #tpu.dot_dimension_numbers<[1], [0], [0], [1], [0, 0, 1, 1], [], []>} : vector<16x32xbf16>, vector<32x32xbf16>, vector<16x32xf32> -> vector<16x32xf32>
    %32 = arith.addf %26, %31 : vector<16x32xf32>
    %c2_30 = arith.constant 2 : index
    %c0_31 = arith.constant 0 : index
    %c0_32 = arith.constant 0 : index
    %33 = vector.load %arg9[%c2_30, %c0_31, %c0_32] : memref<3x16x32xf32, #tpu.memory_space<vmem>>, vector<1x16x32xf32>
    %34 = vector.shape_cast %33 : vector<1x16x32xf32> to vector<16x32xf32>
    %35 = vector.shape_cast %32 : vector<16x32xf32> to vector<1x16x32xf32>
    tpu.vector_store %arg9[%c2_30, %c0_31, %c0_32], %35 {strides = array<i32>} : memref<3x16x32xf32, #tpu.memory_space<vmem>>, vector<1x16x32xf32>,
    %c0_i32_33 = arith.constant 0 : i32
    %36 = arith.cmpi eq, %arg2, %c0_i32_33 : i32
    %37 = arith.extui %36 : i1 to i32
    %c0_i32_34 = arith.constant 0 : i32
    %38 = arith.cmpi ne, %37, %c0_i32_34 : i32
    scf.if %38 {
      %c0_35 = arith.constant 0 : index
      %c0_36 = arith.constant 0 : index
      %c0_37 = arith.constant 0 : index
      %39 = vector.load %arg9[%c0_35, %c0_36, %c0_37] : memref<3x16x32xf32, #tpu.memory_space<vmem>>, vector<3x16x32xf32>
      %c0_38 = arith.constant 0 : index
      %c0_39 = arith.constant 0 : index
      %c0_40 = arith.constant 0 : index
      %40 = vector.load %arg7[%c0_38, %c0_39, %c0_40] : memref<3x1x32xf32, #tpu.memory_space<vmem>>, vector<3x1x32xf32>
      %41 = vector.broadcast %40 : vector<3x1x32xf32> to vector<3x16x32xf32>
      %42 = arith.addf %39, %41 : vector<3x16x32xf32>
      %43 = arith.truncf %42 : vector<3x16x32xf32> to vector<3x16x32xbf16>
      %c0_41 = arith.constant 0 : index
      %c0_42 = arith.constant 0 : index
      %c0_43 = arith.constant 0 : index
      %44 = vector.load %arg8[%c0_41, %c0_42, %c0_43] : memref<3x16x32xbf16, #tpu.memory_space<vmem>>, vector<3x16x32xbf16>
      tpu.vector_store %arg8[%c0_41, %c0_42, %c0_43], %43 {strides = array<i32>} : memref<3x16x32xbf16, #tpu.memory_space<vmem>>, vector<3x16x32xbf16>,
    } else {
    }
    return
  }
  func.func @transform_0(%arg0: i32, %arg1: i32, %arg2: i32) -> (i32, i32) {
    %c0_i32 = arith.constant 0 : i32
    return %arg0, %arg2 : i32, i32
  }
  func.func @transform_1(%arg0: i32, %arg1: i32, %arg2: i32) -> (i32, i32) {
    %c0_i32 = arith.constant 0 : i32
    return %arg0, %arg2 : i32, i32
  }
  func.func @transform_2(%arg0: i32, %arg1: i32, %arg2: i32) -> (i32, i32) {
    %c0_i32 = arith.constant 0 : i32
    return %arg0, %arg2 : i32, i32
  }
  func.func @transform_3(%arg0: i32, %arg1: i32, %arg2: i32) -> (i32, i32, i32) {
    %c0_i32 = arith.constant 0 : i32
    %c0_i32_0 = arith.constant 0 : i32
    return %c0_i32, %arg2, %arg1 : i32, i32, i32
  }
  func.func @transform_4(%arg0: i32, %arg1: i32, %arg2: i32) -> (i32, i32, i32) {
    %c0_i32 = arith.constant 0 : i32
    %c0_i32_0 = arith.constant 0 : i32
    %c0_i32_1 = arith.constant 0 : i32
    return %c0_i32, %c0_i32_0, %arg1 : i32, i32, i32
  }
  func.func @transform_5(%arg0: i32, %arg1: i32, %arg2: i32) -> (i32, i32, i32) {
    %c0_i32 = arith.constant 0 : i32
    %c0_i32_0 = arith.constant 0 : i32
    return %c0_i32, %arg0, %arg1 : i32, i32, i32
  }
}

module attributes {stable_mosaic.version = 11 : i64} {
  func.func @_sdpa_kernel(%arg0: i32, %arg1: memref<4x8x8xbf16, #tpu.memory_space<vmem>>, %arg2: memref<4x8x8xbf16, #tpu.memory_space<vmem>>, %arg3: memref<4x8x8xbf16, #tpu.memory_space<vmem>>, %arg4: memref<2x8x8xf32, #tpu.memory_space<vmem>>, %arg5: memref<4x8x8xbf16, #tpu.memory_space<vmem>>, %arg6: memref<4x8x8xbf16, #tpu.memory_space<vmem>>) attributes {dimension_semantics = [#tpu.dimension_semantics<parallel>], iteration_bounds = array<i64: 2>, scalar_prefetch = 0 : i64, scratch_operands = 0 : i64, tpu.core_type = #tpu.core_type<tc>, window_params = [{transform_indices = @transform_0, window_bounds = array<i64: 4, 8, 8>}, {transform_indices = @transform_1, window_bounds = array<i64: 4, 8, 8>}, {transform_indices = @transform_2, window_bounds = array<i64: 4, 8, 8>}, {pipeline_mode = #tpu.pipeline_mode<synchronous>, transform_indices = @transform_3, window_bounds = array<i64: 2, 8, 8>}, {transform_indices = @transform_4, window_bounds = array<i64: 4, 8, 8>}, {transform_indices = @transform_5, window_bounds = array<i64: 4, 8, 8>}]} {
    %c0 = arith.constant 0 : index
    %c0_0 = arith.constant 0 : index
    %c0_1 = arith.constant 0 : index
    %0 = vector.load %arg1[%c0, %c0_0, %c0_1] : memref<4x8x8xbf16, #tpu.memory_space<vmem>>, vector<4x8x8xbf16>
    %c0_2 = arith.constant 0 : index
    %c0_3 = arith.constant 0 : index
    %c0_4 = arith.constant 0 : index
    %1 = vector.load %arg2[%c0_2, %c0_3, %c0_4] : memref<4x8x8xbf16, #tpu.memory_space<vmem>>, vector<4x8x8xbf16>
    %cst = arith.constant dense<0.000000e+00> : vector<4x8x8xf32>
    %2 = tpu.matmul %0, %1, %cst {dimension_numbers = #tpu.dot_dimension_numbers<[2], [2], [1], [1], [0, 0, 0, 1, 1, 1], [0], [0]>} : vector<4x8x8xbf16>, vector<4x8x8xbf16>, vector<4x8x8xf32> -> vector<4x8x8xf32>
    %cst_5 = arith.constant 0.707106769 : f32
    %3 = vector.broadcast %cst_5 : f32 to vector<4x8x8xf32>
    %4 = arith.mulf %2, %3 : vector<4x8x8xf32>
    %c0_6 = arith.constant 0 : index
    %c0_7 = arith.constant 0 : index
    %c0_8 = arith.constant 0 : index
    %5 = vector.load %arg4[%c0_6, %c0_7, %c0_8] : memref<2x8x8xf32, #tpu.memory_space<vmem>>, vector<2x8x8xf32>
    %6 = vector.shape_cast %5 : vector<2x8x8xf32> to vector<1x2x8x8xf32>
    %7 = vector.shape_cast %6 : vector<1x2x8x8xf32> to vector<1x2x8x8xf32>
    %8 = vector.broadcast %7 : vector<1x2x8x8xf32> to vector<2x2x8x8xf32>
    %9 = vector.shape_cast %8 : vector<2x2x8x8xf32> to vector<4x8x8xf32>
    %10 = arith.addf %4, %9 : vector<4x8x8xf32>
    %cst_9 = arith.constant dense<0xFF800000> : vector<4x8xf32>
    %11 = vector.multi_reduction <maximumf>, %10, %cst_9 [2] : vector<4x8x8xf32> to vector<4x8xf32>
    %12 = vector.shape_cast %11 : vector<4x8xf32> to vector<4x8x1xf32>
    %13 = vector.broadcast %12 : vector<4x8x1xf32> to vector<4x8x8xf32>
    %14 = arith.subf %10, %13 : vector<4x8x8xf32>
    %15 = math.exp %14 : vector<4x8x8xf32>
    %cst_10 = arith.constant dense<0.000000e+00> : vector<4x8xf32>
    %16 = vector.multi_reduction <add>, %15, %cst_10 [2] : vector<4x8x8xf32> to vector<4x8xf32>
    %17 = vector.shape_cast %16 : vector<4x8xf32> to vector<4x8x1xf32>
    %18 = tpu.reciprocal %17 {approx = true} : vector<4x8x1xf32> -> vector<4x8x1xf32>
    %19 = vector.broadcast %18 : vector<4x8x1xf32> to vector<4x8x8xf32>
    %20 = arith.mulf %15, %19 : vector<4x8x8xf32>
    %21 = arith.truncf %20 : vector<4x8x8xf32> to vector<4x8x8xbf16>
    %c0_11 = arith.constant 0 : index
    %c0_12 = arith.constant 0 : index
    %c0_13 = arith.constant 0 : index
    %22 = vector.load %arg3[%c0_11, %c0_12, %c0_13] : memref<4x8x8xbf16, #tpu.memory_space<vmem>>, vector<4x8x8xbf16>
    %cst_14 = arith.constant dense<0.000000e+00> : vector<4x8x8xf32>
    %23 = tpu.matmul %21, %22, %cst_14 {dimension_numbers = #tpu.dot_dimension_numbers<[2], [1], [1], [2], [0, 0, 0, 1, 1, 2], [0], [0]>} : vector<4x8x8xbf16>, vector<4x8x8xbf16>, vector<4x8x8xf32> -> vector<4x8x8xf32>
    %24 = arith.truncf %23 : vector<4x8x8xf32> to vector<4x8x8xbf16>
    %c0_15 = arith.constant 0 : index
    %c0_16 = arith.constant 0 : index
    %c0_17 = arith.constant 0 : index
    %25 = vector.load %arg5[%c0_15, %c0_16, %c0_17] : memref<4x8x8xbf16, #tpu.memory_space<vmem>>, vector<4x8x8xbf16>
    tpu.vector_store %arg5[%c0_15, %c0_16, %c0_17], %24 {strides = array<i32>} : memref<4x8x8xbf16, #tpu.memory_space<vmem>>, vector<4x8x8xbf16>,
    %26 = arith.truncf %20 : vector<4x8x8xf32> to vector<4x8x8xbf16>
    %c0_18 = arith.constant 0 : index
    %c0_19 = arith.constant 0 : index
    %c0_20 = arith.constant 0 : index
    %27 = vector.load %arg6[%c0_18, %c0_19, %c0_20] : memref<4x8x8xbf16, #tpu.memory_space<vmem>>, vector<4x8x8xbf16>
    tpu.vector_store %arg6[%c0_18, %c0_19, %c0_20], %26 {strides = array<i32>} : memref<4x8x8xbf16, #tpu.memory_space<vmem>>, vector<4x8x8xbf16>,
    return
  }
  func.func @transform_0(%arg0: i32) -> (i32, i32, i32) {
    %c0_i32 = arith.constant 0 : i32
    %c0_i32_0 = arith.constant 0 : i32
    %c0_i32_1 = arith.constant 0 : i32
    return %arg0, %c0_i32, %c0_i32_0 : i32, i32, i32
  }
  func.func @transform_1(%arg0: i32) -> (i32, i32, i32) {
    %c0_i32 = arith.constant 0 : i32
    %c0_i32_0 = arith.constant 0 : i32
    %c0_i32_1 = arith.constant 0 : i32
    return %arg0, %c0_i32, %c0_i32_0 : i32, i32, i32
  }
  func.func @transform_2(%arg0: i32) -> (i32, i32, i32) {
    %c0_i32 = arith.constant 0 : i32
    %c0_i32_0 = arith.constant 0 : i32
    %c0_i32_1 = arith.constant 0 : i32
    return %arg0, %c0_i32, %c0_i32_0 : i32, i32, i32
  }
  func.func @transform_3(%arg0: i32) -> (i32, i32, i32) {
    %c0_i32 = arith.constant 0 : i32
    %c0_i32_0 = arith.constant 0 : i32
    %c0_i32_1 = arith.constant 0 : i32
    %c0_i32_2 = arith.constant 0 : i32
    return %c0_i32, %c0_i32_0, %c0_i32_1 : i32, i32, i32
  }
  func.func @transform_4(%arg0: i32) -> (i32, i32, i32) {
    %c0_i32 = arith.constant 0 : i32
    %c0_i32_0 = arith.constant 0 : i32
    %c0_i32_1 = arith.constant 0 : i32
    return %arg0, %c0_i32, %c0_i32_0 : i32, i32, i32
  }
  func.func @transform_5(%arg0: i32) -> (i32, i32, i32) {
    %c0_i32 = arith.constant 0 : i32
    %c0_i32_0 = arith.constant 0 : i32
    %c0_i32_1 = arith.constant 0 : i32
    return %arg0, %c0_i32, %c0_i32_0 : i32, i32, i32
  }
}

module attributes {stable_mosaic.version = 11 : i64} {
  func.func @_out_ln_kernel(%arg0: i32, %arg1: i32, %arg2: memref<16x32xbf16, #tpu.memory_space<vmem>>, %arg3: memref<32x32xbf16, #tpu.memory_space<vmem>>, %arg4: memref<1x32xf32, #tpu.memory_space<vmem>>, %arg5: memref<16x32xf32, #tpu.memory_space<vmem>>, %arg6: memref<1x32xf32, #tpu.memory_space<vmem>>, %arg7: memref<1x32xf32, #tpu.memory_space<vmem>>, %arg8: memref<16x32xf32, #tpu.memory_space<vmem>>, %arg9: memref<16x32xf32, #tpu.memory_space<vmem>>) attributes {dimension_semantics = [#tpu.dimension_semantics<parallel>, #tpu.dimension_semantics<arbitrary>], iteration_bounds = array<i64: 1, 1>, scalar_prefetch = 0 : i64, scratch_operands = 1 : i64, tpu.core_type = #tpu.core_type<tc>, window_params = [{transform_indices = @transform_0, window_bounds = array<i64: 16, 32>}, {transform_indices = @transform_1, window_bounds = array<i64: 32, 32>}, {pipeline_mode = #tpu.pipeline_mode<synchronous>, transform_indices = @transform_2, window_bounds = array<i64: 1, 32>}, {transform_indices = @transform_3, window_bounds = array<i64: 16, 32>}, {pipeline_mode = #tpu.pipeline_mode<synchronous>, transform_indices = @transform_4, window_bounds = array<i64: 1, 32>}, {pipeline_mode = #tpu.pipeline_mode<synchronous>, transform_indices = @transform_5, window_bounds = array<i64: 1, 32>}, {transform_indices = @transform_6, window_bounds = array<i64: 16, 32>}]} {
    %c0_i32 = arith.constant 0 : i32
    %0 = arith.cmpi eq, %arg1, %c0_i32 : i32
    %1 = arith.extui %0 : i1 to i32
    %c0_i32_0 = arith.constant 0 : i32
    %2 = arith.cmpi ne, %1, %c0_i32_0 : i32
    scf.if %2 {
      %cst_10 = arith.constant 0.000000e+00 : f32
      %12 = vector.broadcast %cst_10 : f32 to vector<16x32xf32>
      %c0_11 = arith.constant 0 : index
      %c0_12 = arith.constant 0 : index
      %13 = vector.load %arg9[%c0_11, %c0_12] : memref<16x32xf32, #tpu.memory_space<vmem>>, vector<16x32xf32>
      tpu.vector_store %arg9[%c0_11, %c0_12], %12 {strides = array<i32>} : memref<16x32xf32, #tpu.memory_space<vmem>>, vector<16x32xf32>,
    } else {
    }
    %c0 = arith.constant 0 : index
    %c0_1 = arith.constant 0 : index
    %3 = vector.load %arg9[%c0, %c0_1] : memref<16x32xf32, #tpu.memory_space<vmem>>, vector<16x32xf32>
    %c0_2 = arith.constant 0 : index
    %c0_3 = arith.constant 0 : index
    %4 = vector.load %arg2[%c0_2, %c0_3] : memref<16x32xbf16, #tpu.memory_space<vmem>>, vector<16x32xbf16>
    %c0_4 = arith.constant 0 : index
    %c0_5 = arith.constant 0 : index
    %5 = vector.load %arg3[%c0_4, %c0_5] : memref<32x32xbf16, #tpu.memory_space<vmem>>, vector<32x32xbf16>
    %cst = arith.constant dense<0.000000e+00> : vector<16x32xf32>
    %6 = tpu.matmul %4, %5, %cst {dimension_numbers = #tpu.dot_dimension_numbers<[1], [0], [0], [1], [0, 0, 1, 1], [], []>} : vector<16x32xbf16>, vector<32x32xbf16>, vector<16x32xf32> -> vector<16x32xf32>
    %7 = arith.addf %3, %6 : vector<16x32xf32>
    %c0_6 = arith.constant 0 : index
    %c0_7 = arith.constant 0 : index
    %8 = vector.load %arg9[%c0_6, %c0_7] : memref<16x32xf32, #tpu.memory_space<vmem>>, vector<16x32xf32>
    tpu.vector_store %arg9[%c0_6, %c0_7], %7 {strides = array<i32>} : memref<16x32xf32, #tpu.memory_space<vmem>>, vector<16x32xf32>,
    %c0_i32_8 = arith.constant 0 : i32
    %9 = arith.cmpi eq, %arg1, %c0_i32_8 : i32
    %10 = arith.extui %9 : i1 to i32
    %c0_i32_9 = arith.constant 0 : i32
    %11 = arith.cmpi ne, %10, %c0_i32_9 : i32
    scf.if %11 {
      %c0_10 = arith.constant 0 : index
      %c0_11 = arith.constant 0 : index
      %12 = vector.load %arg9[%c0_10, %c0_11] : memref<16x32xf32, #tpu.memory_space<vmem>>, vector<16x32xf32>
      %c0_12 = arith.constant 0 : index
      %c0_13 = arith.constant 0 : index
      %13 = vector.load %arg4[%c0_12, %c0_13] : memref<1x32xf32, #tpu.memory_space<vmem>>, vector<1x32xf32>
      %14 = vector.broadcast %13 : vector<1x32xf32> to vector<16x32xf32>
      %15 = arith.addf %12, %14 : vector<16x32xf32>
      %c0_14 = arith.constant 0 : index
      %c0_15 = arith.constant 0 : index
      %16 = vector.load %arg5[%c0_14, %c0_15] : memref<16x32xf32, #tpu.memory_space<vmem>>, vector<16x32xf32>
      %17 = arith.addf %15, %16 : vector<16x32xf32>
      %cst_16 = arith.constant dense<0.000000e+00> : vector<16xf32>
      %18 = vector.multi_reduction <add>, %17, %cst_16 [1] : vector<16x32xf32> to vector<16xf32>
      %19 = vector.shape_cast %18 : vector<16xf32> to vector<16x1xf32>
      %cst_17 = arith.constant 3.200000e+01 : f32
      %20 = vector.broadcast %cst_17 : f32 to vector<16x1xf32>
      %21 = arith.divf %19, %20 : vector<16x1xf32>
      %22 = vector.broadcast %21 : vector<16x1xf32> to vector<16x32xf32>
      %23 = arith.subf %17, %22 : vector<16x32xf32>
      %24 = arith.mulf %23, %23 : vector<16x32xf32>
      %cst_18 = arith.constant dense<0.000000e+00> : vector<16xf32>
      %25 = vector.multi_reduction <add>, %24, %cst_18 [1] : vector<16x32xf32> to vector<16xf32>
      %26 = vector.shape_cast %25 : vector<16xf32> to vector<16x1xf32>
      %cst_19 = arith.constant 3.200000e+01 : f32
      %27 = vector.broadcast %cst_19 : f32 to vector<16x1xf32>
      %28 = arith.divf %26, %27 : vector<16x1xf32>
      %29 = vector.broadcast %21 : vector<16x1xf32> to vector<16x32xf32>
      %30 = arith.subf %17, %29 : vector<16x32xf32>
      %cst_20 = arith.constant 9.99999974E-6 : f32
      %31 = vector.broadcast %cst_20 : f32 to vector<16x1xf32>
      %32 = arith.addf %28, %31 : vector<16x1xf32>
      %33 = math.rsqrt %32 : vector<16x1xf32>
      %34 = vector.broadcast %33 : vector<16x1xf32> to vector<16x32xf32>
      %35 = arith.mulf %30, %34 : vector<16x32xf32>
      %c0_21 = arith.constant 0 : index
      %c0_22 = arith.constant 0 : index
      %36 = vector.load %arg6[%c0_21, %c0_22] : memref<1x32xf32, #tpu.memory_space<vmem>>, vector<1x32xf32>
      %37 = vector.broadcast %36 : vector<1x32xf32> to vector<16x32xf32>
      %38 = arith.mulf %35, %37 : vector<16x32xf32>
      %c0_23 = arith.constant 0 : index
      %c0_24 = arith.constant 0 : index
      %39 = vector.load %arg7[%c0_23, %c0_24] : memref<1x32xf32, #tpu.memory_space<vmem>>, vector<1x32xf32>
      %40 = vector.broadcast %39 : vector<1x32xf32> to vector<16x32xf32>
      %41 = arith.addf %38, %40 : vector<16x32xf32>
      %c0_25 = arith.constant 0 : index
      %c0_26 = arith.constant 0 : index
      %42 = vector.load %arg8[%c0_25, %c0_26] : memref<16x32xf32, #tpu.memory_space<vmem>>, vector<16x32xf32>
      tpu.vector_store %arg8[%c0_25, %c0_26], %41 {strides = array<i32>} : memref<16x32xf32, #tpu.memory_space<vmem>>, vector<16x32xf32>,
    } else {
    }
    return
  }
  func.func @transform_0(%arg0: i32, %arg1: i32) -> (i32, i32) {
    %c0_i32 = arith.constant 0 : i32
    return %arg0, %arg1 : i32, i32
  }
  func.func @transform_1(%arg0: i32, %arg1: i32) -> (i32, i32) {
    %c0_i32 = arith.constant 0 : i32
    %c0_i32_0 = arith.constant 0 : i32
    return %arg1, %c0_i32 : i32, i32
  }
  func.func @transform_2(%arg0: i32, %arg1: i32) -> (i32, i32) {
    %c0_i32 = arith.constant 0 : i32
    %c0_i32_0 = arith.constant 0 : i32
    %c0_i32_1 = arith.constant 0 : i32
    return %c0_i32, %c0_i32_0 : i32, i32
  }
  func.func @transform_3(%arg0: i32, %arg1: i32) -> (i32, i32) {
    %c0_i32 = arith.constant 0 : i32
    %c0_i32_0 = arith.constant 0 : i32
    return %arg0, %c0_i32 : i32, i32
  }
  func.func @transform_4(%arg0: i32, %arg1: i32) -> (i32, i32) {
    %c0_i32 = arith.constant 0 : i32
    %c0_i32_0 = arith.constant 0 : i32
    %c0_i32_1 = arith.constant 0 : i32
    return %c0_i32, %c0_i32_0 : i32, i32
  }
  func.func @transform_5(%arg0: i32, %arg1: i32) -> (i32, i32) {
    %c0_i32 = arith.constant 0 : i32
    %c0_i32_0 = arith.constant 0 : i32
    %c0_i32_1 = arith.constant 0 : i32
    return %c0_i32, %c0_i32_0 : i32, i32
  }
  func.func @transform_6(%arg0: i32, %arg1: i32) -> (i32, i32) {
    %c0_i32 = arith.constant 0 : i32
    %c0_i32_0 = arith.constant 0 : i32
    return %arg0, %c0_i32 : i32, i32
  }
}

</mosaic_0001>

<llo_original>
// kernel: squeeze.4
$region0: #{squeeze.4}
  %s0 = inlined_call_operand.vmem [shape: bf16[1,16,32], index: 0, kind: input, shape index: {}]
  %s1 = inlined_call_operand.vmem [shape: bf16[8,8,8], index: 1, kind: output, shape index: {}]
  $region1: #{squeeze.4} parent=0
    #allocation0 [shape = 'u8[32768]{0}', space=vmem, size = 0x8000, scoped, tag = 'scoped mem for output reshape']
    #allocation1 [shape = 'u8[8192]{0}', space=vmem, size = 0x2000, scoped, tag = 'scoped mem for input reshape']
    %s3 = smul.u32 4, 2
    %s4 = sshllo.u32 0, %s3
    %s5 = scalar_lea.vmem %s0, 4
    %s6 = sshrl.u32 %s4, 1
    %s7 = sor.u32 %s4, %s6
    %s8 = sand.u32 %s7, 85
    %s9 = sshrl.u32 %s8, 1
    %s10 = sor.u32 %s8, %s9
    %s11 = sand.u32 51, %s10
    %s12 = sshrl.u32 %s11, 2
    %s13 = sor.u32 %s11, %s12
    %s14 = sand.u32 15, %s13
    %v15 = vld [vmem:[%s5] sm:%s14]
    %v16 = vunpack.c.l.bf16 %v15
    %v17 = vunpack.c.h.bf16 %v15
    %s18 = scalar_lea.vmem [#allocation1], 8
    %19 = vst [vmem:[%s18] sm:%s4] %v16
    %s20 = sshrl.u32 %s4, 1
    %s21 = sor.u32 %s4, %s20
    %s22 = sand.u32 %s21, 85
    %s23 = sshrl.u32 %s22, 1
    %s24 = sor.u32 %s22, %s23
    %s25 = sand.u32 51, %s24
    %s26 = sshrl.u32 %s25, 2
    %s27 = sor.u32 %s25, %s26
    %s28 = sand.u32 15, %s27
    %v29 = vld [vmem:[%s0] sm:%s28]
    %v30 = vunpack.c.l.bf16 %v29
    %v31 = vunpack.c.h.bf16 %v29
    %32 = vst [vmem:[#allocation1] sm:%s4] %v30
    %v33 = vld [vmem:[#allocation1] sm:$0xff]
    %vm34 = vcmask 64512
    %35 = vst.msk [vmem:[#allocation0] ss:$4 sm:$0xff] %vm34, %v33
    %s36 = scalar_lea.vmem [#allocation1], 8
    %v37 = vld [vmem:[%s36] sm:$0xff]
    %vm38 = vcmask 64512
    %s39 = scalar_lea.vmem [#allocation0], 32
    %40 = vst.msk [vmem:[%s39] ss:$4 sm:$0xff] %vm38, %v37
    %v41 = vld [vmem:[#allocation1] sm:$0xff]
    %42 = vrot.lane.b32.xlu0 %v41, 120
    %v43 = vpop.permute.xlu0 %42
    %vm44 = vcmask 64512
    %s45 = scalar_lea.vmem [#allocation0], 1
    %46 = vst.msk [vmem:[%s45] ss:$4 sm:$0xff] %vm44, %v43
    %s47 = scalar_lea.vmem [#allocation1], 8
    %v48 = vld [vmem:[%s47] sm:$0xff]
    %49 = vrot.lane.b32.xlu0 %v48, 120
    %v50 = vpop.permute.xlu0 %49
    %vm51 = vcmask 64512
    %s52 = scalar_lea.vmem [#allocation0], 33
    %53 = vst.msk [vmem:[%s52] ss:$4 sm:$0xff] %vm51, %v50
    %v54 = vld [vmem:[#allocation1] sm:$0xff]
    %55 = vrot.lane.b32.xlu0 %v54, 112
    %v56 = vpop.permute.xlu0 %55
    %vm57 = vcmask 64512
    %s58 = scalar_lea.vmem [#allocation0], 2
    %59 = vst.msk [vmem:[%s58] ss:$4 sm:$0xff] %vm57, %v56
    %s60 = scalar_lea.vmem [#allocation1], 8
    %v61 = vld [vmem:[%s60] sm:$0xff]
    %62 = vrot.lane.b32.xlu0 %v61, 112
    %v63 = vpop.permute.xlu0 %62
    %vm64 = vcmask 64512
    %s65 = scalar_lea.vmem [#allocation0], 34
    %66 = vst.msk [vmem:[%s65] ss:$4 sm:$0xff] %vm64, %v63
    %v67 = vld [vmem:[#allocation1] sm:$0xff]
    %68 = vrot.lane.b32.xlu0 %v67, 104
    %v69 = vpop.permute.xlu0 %68
    %vm70 = vcmask 64512
    %s71 = scalar_lea.vmem [#allocation0], 3
    %72 = vst.msk [vmem:[%s71] ss:$4 sm:$0xff] %vm70, %v69
    %s73 = scalar_lea.vmem [#allocation1], 8
    %v74 = vld [vmem:[%s73] sm:$0xff]
    %75 = vrot.lane.b32.xlu0 %v74, 104
    %v76 = vpop.permute.xlu0 %75
    %vm77 = vcmask 64512
    %s78 = scalar_lea.vmem [#allocation0], 35
    %79 = vst.msk [vmem:[%s78] ss:$4 sm:$0xff] %vm77, %v76
    %s81 = smul.u32 4, 2
    %s82 = sshllo.u32 0, %s81
    %s83 = sshrl.u32 %s81, 1
    %v84 = vld [vmem:[#allocation0] sm:%s82]
    %v85 = vpack.c.bf16 0.0, %v84
    %s86 = sshllo.u32 0, %s83
    %87 = vst [vmem:[%s1] sm:%s86] %v85
    %s88 = scalar_lea.vmem [#allocation0], 8
    %v89 = vld [vmem:[%s88] sm:%s82]
    %v90 = vpack.c.bf16 0.0, %v89
    %s91 = sshllo.u32 0, %s83
    %s92 = scalar_lea.vmem %s1, 4
    %93 = vst [vmem:[%s92] sm:%s91] %v90
    %s94 = scalar_lea.vmem [#allocation0], 16
    %v95 = vld [vmem:[%s94] sm:%s82]
    %v96 = vpack.c.bf16 0.0, %v95
    %s97 = sshllo.u32 0, %s83
    %s98 = smul.addr 4, 2
    %s99 = scalar_lea.vmem %s1, %s98
    %100 = vst [vmem:[%s99] sm:%s97] %v96
    %s101 = scalar_lea.vmem [#allocation0], 24
    %v102 = vld [vmem:[%s101] sm:%s82]
    %v103 = vpack.c.bf16 0.0, %v102
    %s104 = sshllo.u32 0, %s83
    %s105 = smul.addr 4, 3
    %s106 = scalar_lea.vmem %s1, %s105
    %107 = vst [vmem:[%s106] sm:%s104] %v103
    %s108 = scalar_lea.vmem [#allocation0], 32
    %v109 = vld [vmem:[%s108] sm:%s82]
    %v110 = vpack.c.bf16 0.0, %v109
    %s111 = sshllo.u32 0, %s83
    %s112 = smul.addr 4, 4
    %s113 = scalar_lea.vmem %s1, %s112
    %114 = vst [vmem:[%s113] sm:%s111] %v110
    %s115 = scalar_lea.vmem [#allocation0], 40
    %v116 = vld [vmem:[%s115] sm:%s82]
    %v117 = vpack.c.bf16 0.0, %v116
    %s118 = sshllo.u32 0, %s83
    %s119 = smul.addr 4, 5
    %s120 = scalar_lea.vmem %s1, %s119
    %121 = vst [vmem:[%s120] sm:%s118] %v117
    %s122 = scalar_lea.vmem [#allocation0], 48
    %v123 = vld [vmem:[%s122] sm:%s82]
    %v124 = vpack.c.bf16 0.0, %v123
    %s125 = sshllo.u32 0, %s83
    %s126 = smul.addr 4, 6
    %s127 = scalar_lea.vmem %s1, %s126
    %128 = vst [vmem:[%s127] sm:%s125] %v124
    %s129 = scalar_lea.vmem [#allocation0], 56
    %v130 = vld [vmem:[%s129] sm:%s82]
    %v131 = vpack.c.bf16 0.0, %v130
    %s132 = sshllo.u32 0, %s83
    %s133 = smul.addr 4, 7
    %s134 = scalar_lea.vmem %s1, %s133
    %135 = vst [vmem:[%s134] sm:%s132] %v131

// kernel: multi_head_attention.3
$region0: #{multi_head_attention.3}
  #allocation0 [shape = 'u32[]', space=smem, size = 0x4, offset = 0x4, fixed_abs, tag = 'smem constant byte address 0x4 - core index']
  #allocation1 [shape = 'u32[144,128]{1,0:T(1,128)}', space=vmem, size = 0x12000, scoped, tag = 'internal scratch']
  #allocation2 [shape = 'f32[3,16,32]{2,1,0:T(8,128)}', space=vmem, size = 0x6000, scoped, tag = 'scratch operand']
  %s0 = inlined_call_operand.hbm [shape: f32[16,32], index: 0, kind: input, shape index: {}]
  %s1 = inlined_call_operand.vmem [shape: f32[16,32], index: 1, kind: input, shape index: {}]
  %s2 = inlined_call_operand.vmem [shape: f32[16,32], index: 2, kind: input, shape index: {}]
  %s3 = inlined_call_operand.vmem [shape: bf16[3,32,32], index: 3, kind: input, shape index: {}]
  %s4 = inlined_call_operand.hbm [shape: f32[3,1,32], index: 4, kind: input, shape index: {}]
  %s5 = inlined_call_operand.vmem [shape: bf16[3,16,32], index: 5, kind: output, shape index: {}]
  %s6 = sld [smem:[#allocation0]]
  $region46: #{multi_head_attention.3} parent=0
    _
  %s8 = ssub.s32 1, %s6
  %s9 = scalar_select 0, %s8, %s6
  $region1: #{multi_head_attention.3} parent=0
    #allocation3 [shape = 'u8[8192]{0}', space=vmem, size = 0x2000, scoped, tag = 'input window, operand 0, single buffered']
    #allocation4 [shape = 's32[1]{0}', space=sflag, size = 0x4, scoped, tag = 'scoped memory for multi_head_attention.3']
    #allocation5 [shape = 'u8[1536]{0}', space=vmem, size = 0x800, scoped, tag = 'input window, operand 4, single buffered']
    #allocation6 [shape = 's32[1]{0}', space=sflag, size = 0x4, scoped, tag = 'scoped memory for multi_head_attention.3']
    %10 = vsyncpa [#allocation4], 0
    %11 = vsyncpa [#allocation6], 0
    // Predicated region
    $region2: #{multi_head_attention.3} parent=1 // pred_check
      _
    $region3: #{multi_head_attention.3} parent=1 // pred_check_branch
      %13 = sbr.rel (0) target = $region5
    $region4: #{multi_head_attention.3} parent=1 // pred_region
      %s15 = ssub.s32 256, 256
      %16 = vsyncadd [#allocation4], %s15
      %s17 = sshll.u32 [#allocation3], 4
      %s18 = int_to_ptr.vmem [resolvable:$true] %s17
      %23 = dma.hbm_to_vmem [thread:$0]  %s0, 256, %s18, [#allocation4], 128, 128, 8
    $region5: #{multi_head_attention.3} parent=1 // pred_fallthru
      _
    // Predicated region
    $region6: #{multi_head_attention.3} parent=1 // pred_check
      _
    $region7: #{multi_head_attention.3} parent=1 // pred_check_branch
      %25 = sbr.rel (0) target = $region9
    $region8: #{multi_head_attention.3} parent=1 // pred_region
      _
    $region9: #{multi_head_attention.3} parent=1 // pred_fallthru
      _
    // Predicated region
    $region10: #{multi_head_attention.3} parent=1 // pred_check
      _
    $region11: #{multi_head_attention.3} parent=1 // pred_check_branch
      %27 = sbr.rel (0) target = $region13
    $region12: #{multi_head_attention.3} parent=1 // pred_region
      _
    $region13: #{multi_head_attention.3} parent=1 // pred_fallthru
      _
    // Predicated region
    $region14: #{multi_head_attention.3} parent=1 // pred_check
      _
    $region15: #{multi_head_attention.3} parent=1 // pred_check_branch
      %29 = sbr.rel (0) target = $region17
    $region16: #{multi_head_attention.3} parent=1 // pred_region
      _
    $region17: #{multi_head_attention.3} parent=1 // pred_fallthru
      _
    // Predicated region
    $region18: #{multi_head_attention.3} parent=1 // pred_check
      _
    $region19: #{multi_head_attention.3} parent=1 // pred_check_branch
      %31 = sbr.rel (0) target = $region21
    $region20: #{multi_head_attention.3} parent=1 // pred_region
      %s33 = ssub.s32 48, 48
      %34 = vsyncadd [#allocation6], %s33
      %s35 = sshll.u32 [#allocation5], 4
      %s36 = int_to_ptr.vmem [resolvable:$true] %s35
      %41 = dma.hbm_to_vmem [thread:$0]  %s4, 48, %s36, [#allocation6], 16, 16, 1
    $region21: #{multi_head_attention.3} parent=1 // pred_fallthru
      _
    // Predicated region
    $region22: #{multi_head_attention.3} parent=1 // pred_check
      _
    $region23: #{multi_head_attention.3} parent=1 // pred_check_branch
      %43 = sbr.rel (0) target = $region25
    $region24: #{multi_head_attention.3} parent=1 // pred_region
      %44 = dma.done [#allocation4], 256
    $region25: #{multi_head_attention.3} parent=1 // pred_fallthru
      _
    // Predicated region
    $region26: #{multi_head_attention.3} parent=1 // pred_check
      _
    $region27: #{multi_head_attention.3} parent=1 // pred_check_branch
      %46 = sbr.rel (0) target = $region29
    $region28: #{multi_head_attention.3} parent=1 // pred_region
      %47 = dma.done [#allocation6], 48
    $region29: #{multi_head_attention.3} parent=1 // pred_fallthru
      _
    %p49 = scmp.eq.s32.totalorder 0, 0
    // Predicated region
    $region30: #{multi_head_attention.3} parent=1 // pred_check
      %p50 = pneg %p49
    $region31: #{multi_head_attention.3} parent=1 // pred_check_branch
      %52 = sbr.rel (%p50) target = $region33
    $region32: #{multi_head_attention.3} parent=1 // pred_region
      %vm53 = vcmask 261120
      %54 = vst.msk [vmem:[#allocation2] sm:$0xff] %vm53, 0.0
      %55 = vst.msk [vmem:[#allocation2 + $0x8] sm:$0xff] %vm53, 0.0
      %56 = vst.msk [vmem:[#allocation2 + $0x10] sm:$0xff] %vm53, 0.0
      %57 = vst.msk [vmem:[#allocation2 + $0x18] sm:$0xff] %vm53, 0.0
      %58 = vst.msk [vmem:[#allocation2 + $0x20] sm:$0xff] %vm53, 0.0
      %59 = vst.msk [vmem:[#allocation2 + $0x28] sm:$0xff] %vm53, 0.0
    $region33: #{multi_head_attention.3} parent=1 // pred_fallthru
      _
    %v60 = vld [vmem:[#allocation2] sm:$0xff]
    %v61 = vld [vmem:[#allocation2 + $0x8] sm:$0xff]
    %v62 = vld [vmem:[#allocation3] sm:$0xff]
    %v63 = vld [vmem:[#allocation3 + $0x8] sm:$0xff]
    %v64 = vpack.c.bf16 %v63, %v62
    %v65 = vld [vmem:[%s3] sm:$0xf]
    %v66 = vld [vmem:[%s3 + $0x4] sm:$0xf]
    %v67 = vld [vmem:[%s3 + $0x8] sm:$0xf]
    %v68 = vld [vmem:[%s3 + $0xc] sm:$0xf]
    %v73 = vunpack.c.l.b16 %v65
    %v74 = vunpack.c.l.b16 %v66
    %v75 = vunpack.c.l.b16 %v67
    %v76 = vunpack.c.l.b16 %v68
    %v77 = vpack.c.b16 %v74, %v73
    %v78 = vpack.c.b16 %v76, %v75
    %vm81 = vcmask 261120
    %v83 = vsel %vm81, %v64, 0
    %85 = vmatprep.subr.bf16.mxu0 0
    %86 = vmatpush1.bf16.msra.mxu0 %v77
    %87 = vmatprep.subr.bf16.mxu0 0
    %88 = vmatpush1.bf16.msra.mxu0 %v78
    %89 = vmatprep.subr.bf16.mxu0 0
    %90 = vmatpush1.bf16.msra.mxu0 0
    %91 = vmatprep.subr.bf16.mxu0 0
    %92 = vmatpush1.bf16.msra.mxu0 0
    %93 = vmatprep.subr.bf16.mxu0 0
    %94 = vmatpush1.bf16.msra.mxu0 0
    %95 = vmatprep.subr.bf16.mxu0 0
    %96 = vmatpush1.bf16.msra.mxu0 0
    %97 = vmatprep.subr.bf16.mxu0 0
    %98 = vmatpush1.bf16.msra.mxu0 0
    %99 = vmatprep.subr.bf16.mxu0 0
    %100 = vmatpush1.bf16.msra.mxu0 0
    %101 = vmatprep.subr.bf16.mxu0 0
    %102 = vmatpush1.bf16.msra.mxu0 0
    %103 = vmatprep.subr.bf16.mxu0 0
    %104 = vmatpush1.bf16.msra.mxu0 0
    %105 = vmatprep.subr.bf16.mxu0 0
    %106 = vmatpush1.bf16.msra.mxu0 0
    %107 = vmatprep.subr.bf16.mxu0 0
    %108 = vmatpush1.bf16.msra.mxu0 0
    %109 = vmatprep.subr.bf16.mxu0 0
    %110 = vmatpush1.bf16.msra.mxu0 0
    %111 = vmatprep.subr.bf16.mxu0 0
    %112 = vmatpush1.bf16.msra.mxu0 0
    %113 = vmatprep.subr.bf16.mxu0 0
    %114 = vmatpush1.bf16.msra.mxu0 0
    %115 = vmatprep.subr.bf16.mxu0 0
    %116 = vmatpush1.bf16.msra.mxu0 0
    %117 = vmatprep.mubr.bf16.mxu0 0
    %118 = vmatmul.mubr.bf16.gmra.mrb[0].mxu0 %v83
    %v119 = vpop.f32.mrb[0].mxu0
    %v120 = vadd.f32 0.0, %v119
    %v121 = vpop.f32.mrb[0].mxu0
    %v122 = vpop.f32.mrb[0].mxu0
    %v123 = vadd.f32 0.0, %v122
    %v124 = vpop.f32.mrb[0].mxu0
    %125 = vdwg.mxu0
    %v126 = vadd.f32 %v60, %v120
    %v127 = vadd.f32 %v61, %v123
    %128 = vst.msk [vmem:[#allocation2] sm:$0xff] %vm81, %v126
    %129 = vst.msk [vmem:[#allocation2 + $0x8] sm:$0xff] %vm81, %v127
    %s130 = scalar_lea.vmem [#allocation2], 16
    %v131 = vld [vmem:[%s130] sm:$0xff]
    %v132 = vld [vmem:[%s130 + $0x8] sm:$0xff]
    %v133 = vld [vmem:[%s1] sm:$0xff]
    %v134 = vld [vmem:[%s1 + $0x8] sm:$0xff]
    %v135 = vpack.c.bf16 %v134, %v133
    %s136 = scalar_lea.vmem %s3, 16
    %v137 = vld [vmem:[%s136] sm:$0xf]
    %v138 = vld [vmem:[%s136 + $0x4] sm:$0xf]
    %v139 = vld [vmem:[%s136 + $0x8] sm:$0xf]
    %v140 = vld [vmem:[%s136 + $0xc] sm:$0xf]
    %v145 = vunpack.c.l.b16 %v137
    %v146 = vunpack.c.l.b16 %v138
    %v147 = vunpack.c.l.b16 %v139
    %v148 = vunpack.c.l.b16 %v140
    %v149 = vpack.c.b16 %v146, %v145
    %v150 = vpack.c.b16 %v148, %v147
    %v154 = vsel %vm81, %v135, 0
    %156 = vmatprep.subr.bf16.mxu0 0
    %157 = vmatpush1.bf16.msra.mxu0 %v149
    %158 = vmatprep.subr.bf16.mxu0 0
    %159 = vmatpush1.bf16.msra.mxu0 %v150
    %160 = vmatprep.subr.bf16.mxu0 0
    %161 = vmatpush1.bf16.msra.mxu0 0
    %162 = vmatprep.subr.bf16.mxu0 0
    %163 = vmatpush1.bf16.msra.mxu0 0
    %164 = vmatprep.subr.bf16.mxu0 0
    %165 = vmatpush1.bf16.msra.mxu0 0
    %166 = vmatprep.subr.bf16.mxu0 0
    %167 = vmatpush1.bf16.msra.mxu0 0
    %168 = vmatprep.subr.bf16.mxu0 0
    %169 = vmatpush1.bf16.msra.mxu0 0
    %170 = vmatprep.subr.bf16.mxu0 0
    %171 = vmatpush1.bf16.msra.mxu0 0
    %172 = vmatprep.subr.bf16.mxu0 0
    %173 = vmatpush1.bf16.msra.mxu0 0
    %174 = vmatprep.subr.bf16.mxu0 0
    %175 = vmatpush1.bf16.msra.mxu0 0
    %176 = vmatprep.subr.bf16.mxu0 0
    %177 = vmatpush1.bf16.msra.mxu0 0
    %178 = vmatprep.subr.bf16.mxu0 0
    %179 = vmatpush1.bf16.msra.mxu0 0
    %180 = vmatprep.subr.bf16.mxu0 0
    %181 = vmatpush1.bf16.msra.mxu0 0
    %182 = vmatprep.subr.bf16.mxu0 0
    %183 = vmatpush1.bf16.msra.mxu0 0
    %184 = vmatprep.subr.bf16.mxu0 0
    %185 = vmatpush1.bf16.msra.mxu0 0
    %186 = vmatprep.subr.bf16.mxu0 0
    %187 = vmatpush1.bf16.msra.mxu0 0
    %188 = vmatprep.mubr.bf16.mxu0 0
    %189 = vmatmul.mubr.bf16.gmra.mrb[0].mxu0 %v154
    %v190 = vpop.f32.mrb[0].mxu0
    %v191 = vadd.f32 0.0, %v190
    %v192 = vpop.f32.mrb[0].mxu0
    %v193 = vpop.f32.mrb[0].mxu0
    %v194 = vadd.f32 0.0, %v193
    %v195 = vpop.f32.mrb[0].mxu0
    %196 = vdwg.mxu0
    %v197 = vadd.f32 %v131, %v191
    %v198 = vadd.f32 %v132, %v194
    %199 = vst.msk [vmem:[%s130] sm:$0xff] %vm81, %v197
    %200 = vst.msk [vmem:[%s130 + $0x8] sm:$0xff] %vm81, %v198
    %s201 = scalar_lea.vmem [#allocation2], 32
    %v202 = vld [vmem:[%s201] sm:$0xff]
    %v203 = vld [vmem:[%s201 + $0x8] sm:$0xff]
    %v204 = vld [vmem:[%s2] sm:$0xff]
    %v205 = vld [vmem:[%s2 + $0x8] sm:$0xff]
    %v206 = vpack.c.bf16 %v205, %v204
    %s207 = scalar_lea.vmem %s3, 32
    %v208 = vld [vmem:[%s207] sm:$0xf]
    %v209 = vld [vmem:[%s207 + $0x4] sm:$0xf]
    %v210 = vld [vmem:[%s207 + $0x8] sm:$0xf]
    %v211 = vld [vmem:[%s207 + $0xc] sm:$0xf]
    %v216 = vunpack.c.l.b16 %v208
    %v217 = vunpack.c.l.b16 %v209
    %v218 = vunpack.c.l.b16 %v210
    %v219 = vunpack.c.l.b16 %v211
    %v220 = vpack.c.b16 %v217, %v216
    %v221 = vpack.c.b16 %v219, %v218
    %v225 = vsel %vm81, %v206, 0
    %227 = vmatprep.subr.bf16.mxu0 0
    %228 = vmatpush1.bf16.msra.mxu0 %v220
    %229 = vmatprep.subr.bf16.mxu0 0
    %230 = vmatpush1.bf16.msra.mxu0 %v221
    %231 = vmatprep.subr.bf16.mxu0 0
    %232 = vmatpush1.bf16.msra.mxu0 0
    %233 = vmatprep.subr.bf16.mxu0 0
    %234 = vmatpush1.bf16.msra.mxu0 0
    %235 = vmatprep.subr.bf16.mxu0 0
    %236 = vmatpush1.bf16.msra.mxu0 0
    %237 = vmatprep.subr.bf16.mxu0 0
    %238 = vmatpush1.bf16.msra.mxu0 0
    %239 = vmatprep.subr.bf16.mxu0 0
    %240 = vmatpush1.bf16.msra.mxu0 0
    %241 = vmatprep.subr.bf16.mxu0 0
    %242 = vmatpush1.bf16.msra.mxu0 0
    %243 = vmatprep.subr.bf16.mxu0 0
    %244 = vmatpush1.bf16.msra.mxu0 0
    %245 = vmatprep.subr.bf16.mxu0 0
    %246 = vmatpush1.bf16.msra.mxu0 0
    %247 = vmatprep.subr.bf16.mxu0 0
    %248 = vmatpush1.bf16.msra.mxu0 0
    %249 = vmatprep.subr.bf16.mxu0 0
    %250 = vmatpush1.bf16.msra.mxu0 0
    %251 = vmatprep.subr.bf16.mxu0 0
    %252 = vmatpush1.bf16.msra.mxu0 0
    %253 = vmatprep.subr.bf16.mxu0 0
    %254 = vmatpush1.bf16.msra.mxu0 0
    %255 = vmatprep.subr.bf16.mxu0 0
    %256 = vmatpush1.bf16.msra.mxu0 0
    %257 = vmatprep.subr.bf16.mxu0 0
    %258 = vmatpush1.bf16.msra.mxu0 0
    %259 = vmatprep.mubr.bf16.mxu0 0
    %260 = vmatmul.mubr.bf16.gmra.mrb[0].mxu0 %v225
    %v261 = vpop.f32.mrb[0].mxu0
    %v262 = vadd.f32 0.0, %v261
    %v263 = vpop.f32.mrb[0].mxu0
    %v264 = vpop.f32.mrb[0].mxu0
    %v265 = vadd.f32 0.0, %v264
    %v266 = vpop.f32.mrb[0].mxu0
    %267 = vdwg.mxu0
    %v268 = vadd.f32 %v202, %v262
    %v269 = vadd.f32 %v203, %v265
    %270 = vst.msk [vmem:[%s201] sm:$0xff] %vm81, %v268
    %271 = vst.msk [vmem:[%s201 + $0x8] sm:$0xff] %vm81, %v269
    // Predicated region
    $region34: #{multi_head_attention.3} parent=1 // pred_check
      %p272 = pneg %p49
    $region35: #{multi_head_attention.3} parent=1 // pred_check_branch
      %274 = sbr.rel (%p272) target = $region37
    $region36: #{multi_head_attention.3} parent=1 // pred_region
      %v275 = vld [vmem:[#allocation2] sm:$0xff]
      %v276 = vld [vmem:[#allocation2 + $0x8] sm:$0xff]
      %v277 = vld [vmem:[#allocation2 + $0x10] sm:$0xff]
      %v278 = vld [vmem:[#allocation2 + $0x18] sm:$0xff]
      %v279 = vld [vmem:[#allocation2 + $0x20] sm:$0xff]
      %v280 = vld [vmem:[#allocation2 + $0x28] sm:$0xff]
      %v281 = vld [vmem:[#allocation5] sm:$0x1]
      %v282 = vld [vmem:[#allocation5 + $0x1] sm:$0x1]
      %v283 = vld [vmem:[#allocation5 + $0x2] sm:$0x1]
      %v287 = vlaneseq
      %v288 = vshrl.u32 %v287, 7
      %v289 = vsub.s32 0, %v288
      %v290 = vrot.slane %v281, %v289
      %v291 = vlaneseq
      %v292 = vshrl.u32 %v291, 7
      %v293 = vsub.s32 0, %v292
      %v294 = vrot.slane %v282, %v293
      %v295 = vlaneseq
      %v296 = vshrl.u32 %v295, 7
      %v297 = vsub.s32 0, %v296
      %v298 = vrot.slane %v283, %v297
      %v302 = vadd.f32 %v275, %v290
      %v303 = vadd.f32 %v276, %v290
      %v304 = vadd.f32 %v277, %v294
      %v305 = vadd.f32 %v278, %v294
      %v306 = vadd.f32 %v279, %v298
      %v307 = vadd.f32 %v280, %v298
      %v308 = vpack.c.bf16 %v303, %v302
      %v309 = vpack.c.bf16 %v305, %v304
      %v310 = vpack.c.bf16 %v307, %v306
      %v314 = vunpack.c.l.b16 %v308
      %v315 = vunpack.c.h.b16 %v308
      %v316 = vunpack.c.l.b16 %v309
      %v317 = vunpack.c.h.b16 %v309
      %v318 = vunpack.c.l.b16 %v310
      %v319 = vunpack.c.h.b16 %v310
      %v320 = vpack.c.b16 %v314, %v314
      %v321 = vpack.c.b16 %v315, %v315
      %v322 = vpack.c.b16 %v316, %v316
      %v323 = vpack.c.b16 %v317, %v317
      %v324 = vpack.c.b16 %v318, %v318
      %v325 = vpack.c.b16 %v319, %v319
      %vm332 = vcmask 257024
      %333 = vst.msk [vmem:[%s5] sm:$0xf] %vm332, %v320
      %334 = vst.msk [vmem:[%s5 + $0x4] sm:$0xf] %vm332, %v321
      %335 = vst.msk [vmem:[%s5 + $0x8] sm:$0xf] %vm332, %v322
      %336 = vst.msk [vmem:[%s5 + $0xc] sm:$0xf] %vm332, %v323
      %337 = vst.msk [vmem:[%s5 + $0x10] sm:$0xf] %vm332, %v324
      %338 = vst.msk [vmem:[%s5 + $0x14] sm:$0xf] %vm332, %v325
    $region37: #{multi_head_attention.3} parent=1 // pred_fallthru
      _
    // Predicated region
    $region38: #{multi_head_attention.3} parent=1 // pred_check
      _
    $region39: #{multi_head_attention.3} parent=1 // pred_check_branch
      %340 = sbr.rel (0) target = $region41
    $region40: #{multi_head_attention.3} parent=1 // pred_region
      _
    $region41: #{multi_head_attention.3} parent=1 // pred_fallthru
      _
    // Predicated region
    $region42: #{multi_head_attention.3} parent=1 // pred_check
      _
    $region43: #{multi_head_attention.3} parent=1 // pred_check_branch
      %342 = sbr.rel (0) target = $region45
    $region44: #{multi_head_attention.3} parent=1 // pred_region
      _
    $region45: #{multi_head_attention.3} parent=1 // pred_fallthru
      _
    %343 = vsyncpa [#allocation4], 1
    %344 = vsyncpa [#allocation6], 1

// kernel: multi_head_attention.4
$region0: #{multi_head_attention.4}
  #allocation0 [shape = 'u32[]', space=smem, size = 0x4, offset = 0x4, fixed_abs, tag = 'smem constant byte address 0x4 - core index']
  #allocation1 [shape = 'u32[144,128]{1,0:T(1,128)}', space=vmem, size = 0x12000, scoped, tag = 'internal scratch']
  %s0 = inlined_call_operand.vmem [shape: bf16[8,8,8], index: 0, kind: input, shape index: {}]
  %s1 = inlined_call_operand.vmem [shape: bf16[8,8,8], index: 1, kind: input, shape index: {}]
  %s2 = inlined_call_operand.vmem [shape: bf16[8,8,8], index: 2, kind: input, shape index: {}]
  %s3 = inlined_call_operand.vmem [shape: f32[2,8,8], index: 3, kind: input, shape index: {}]
  %s4 = inlined_call_operand.vmem [shape: bf16[8,8,8], index: 4, kind: output, shape index: {0}]
  %s5 = inlined_call_operand.hbm [shape: bf16[8,8,8], index: 5, kind: output, shape index: {1}]
  %6 = xla_tuple %s4, %s5
  %s7 = sld [smem:[#allocation0]]
  $region57: #{multi_head_attention.4} parent=0
    _
  %s9 = ssub.s32 1, %s7
  %s10 = scalar_select 0, %s9, %s7
  $region1: #{multi_head_attention.4} parent=0
    #allocation2 [shape = 'u8[16384]{0}', space=vmem, size = 0x4000, scoped, tag = 'output window, operand 1']
    #allocation3 [shape = 's32[2]{0}', space=sflag, size = 0x8, scoped, tag = 'scoped memory for multi_head_attention.4']
    %11 = vsyncpa [#allocation3], 0
    %s12 = scalar_lea.sflag [#allocation3], 1
    %13 = vsyncpa %s12, 0
    loop: start=0, step=1, limit=4
    $region2: #{multi_head_attention.4} parent=1 // loop_pre_header
      _
    $region3: #{multi_head_attention.4} parent=1 // loop_header
      %s15 = sphi 0, %s19
      %p16 = scmp.ge.s32.totalorder %s15, 4
      %s25 = sphi 0, %s27
      %s28 = sphi 0, %s25
      %s29 = sphi 0, %s28
      %s45 = sphi 0, %s29
      %s51 = sphi 0, %s53
      %s54 = sphi 0, %s51
      %s55 = sphi 0, %s54
      %s71 = sphi 0, %s55
      %s77 = sphi 0, %s79
      %s80 = sphi 0, %s77
      %s81 = sphi 0, %s80
      %s97 = sphi 0, %s81
      %s101 = sphi 0, %s101
      %s103 = sphi 0, %s101
      %s104 = sphi 0, %s103
      %s118 = sphi 0, %s104
      %s124 = sphi 0, %s126
      %s127 = sphi 0, %s124
      %s128 = sphi 0, %s127
      %s144 = sphi 0, %s128
      %s150 = sphi 0, %s152
      %s153 = sphi 0, %s150
      %s154 = sphi 0, %s153
      %s170 = sphi 0, %s154
    $region4: #{multi_head_attention.4} parent=1 // loop_header_branch
      %18 = sbr.rel (%p16) target = $region8
    $region5: #{multi_head_attention.4} parent=1 // loop_body
      %s20 = ssub.s32 %s15, 1
      %s21 = ssub.s32 %s15, 2
      %s22 = sadd.s32 %s15, 1
      %s23 = ssub.s32 %s15, %s22
      %p24 = scmp.eq.s32.totalorder %s23, 0
      %s26 = sadd.s32 %s25, 1
      %s27 = scalar_select %p24, %s25, %s26
      %p30 = pneg %p24
      %p31 = scmp.eq.s32.totalorder %s15, 1
      %p32 = por %p30, %p31
      %p33 = scmp.ne.s32.totalorder %s25, %s28
      %p34 = scmp.eq.s32.totalorder %s15, 0
      %p35 = por %p33, %p34
      %p36 = scmp.ne.s32.totalorder %s25, %s28
      %p37 = scmp.eq.s32.totalorder %s20, 1
      %p38 = por %p36, %p37
      %p39 = scmp.ne.s32.totalorder %s28, %s29
      %p40 = scmp.eq.s32.totalorder %s20, 0
      %p41 = por %p39, %p40
      %p42 = scmp.ne.s32.totalorder %s28, %s29
      %p43 = scmp.eq.s32.totalorder %s21, 1
      %p44 = por %p42, %p43
      %p46 = scmp.ne.s32.totalorder %s29, %s45
      %p47 = scmp.eq.s32.totalorder %s21, 0
      %p48 = por %p46, %p47
      %s49 = ssub.s32 %s15, %s22
      %p50 = scmp.eq.s32.totalorder %s49, 0
      %s52 = sadd.s32 %s51, 1
      %s53 = scalar_select %p50, %s51, %s52
      %p56 = pneg %p50
      %p57 = scmp.eq.s32.totalorder %s15, 1
      %p58 = por %p56, %p57
      %p59 = scmp.ne.s32.totalorder %s51, %s54
      %p60 = scmp.eq.s32.totalorder %s15, 0
      %p61 = por %p59, %p60
      %p62 = scmp.ne.s32.totalorder %s51, %s54
      %p63 = scmp.eq.s32.totalorder %s20, 1
      %p64 = por %p62, %p63
      %p65 = scmp.ne.s32.totalorder %s54, %s55
      %p66 = scmp.eq.s32.totalorder %s20, 0
      %p67 = por %p65, %p66
      %p68 = scmp.ne.s32.totalorder %s54, %s55
      %p69 = scmp.eq.s32.totalorder %s21, 1
      %p70 = por %p68, %p69
      %p72 = scmp.ne.s32.totalorder %s55, %s71
      %p73 = scmp.eq.s32.totalorder %s21, 0
      %p74 = por %p72, %p73
      %s75 = ssub.s32 %s15, %s22
      %p76 = scmp.eq.s32.totalorder %s75, 0
      %s78 = sadd.s32 %s77, 1
      %s79 = scalar_select %p76, %s77, %s78
      %p82 = pneg %p76
      %p83 = scmp.eq.s32.totalorder %s15, 1
      %p84 = por %p82, %p83
      %p85 = scmp.ne.s32.totalorder %s77, %s80
      %p86 = scmp.eq.s32.totalorder %s15, 0
      %p87 = por %p85, %p86
      %p88 = scmp.ne.s32.totalorder %s77, %s80
      %p89 = scmp.eq.s32.totalorder %s20, 1
      %p90 = por %p88, %p89
      %p91 = scmp.ne.s32.totalorder %s80, %s81
      %p92 = scmp.eq.s32.totalorder %s20, 0
      %p93 = por %p91, %p92
      %p94 = scmp.ne.s32.totalorder %s80, %s81
      %p95 = scmp.eq.s32.totalorder %s21, 1
      %p96 = por %p94, %p95
      %p98 = scmp.ne.s32.totalorder %s81, %s97
      %p99 = scmp.eq.s32.totalorder %s21, 0
      %p100 = por %p98, %p99
      %s102 = sadd.s32 %s101, 1
      %p105 = scmp.eq.s32.totalorder %s15, 1
      %p106 = scmp.ne.s32.totalorder %s101, %s103
      %p107 = scmp.eq.s32.totalorder %s15, 0
      %p108 = por %p106, %p107
      %p109 = scmp.ne.s32.totalorder %s101, %s103
      %p110 = scmp.eq.s32.totalorder %s20, 1
      %p111 = por %p109, %p110
      %p112 = scmp.ne.s32.totalorder %s103, %s104
      %p113 = scmp.eq.s32.totalorder %s20, 0
      %p114 = por %p112, %p113
      %p115 = scmp.ne.s32.totalorder %s103, %s104
      %p116 = scmp.eq.s32.totalorder %s21, 1
      %p117 = por %p115, %p116
      %p119 = scmp.ne.s32.totalorder %s104, %s118
      %p120 = scmp.eq.s32.totalorder %s21, 0
      %p121 = por %p119, %p120
      %s122 = ssub.s32 %s15, %s22
      %p123 = scmp.eq.s32.totalorder %s122, 0
      %s125 = sadd.s32 %s124, 1
      %s126 = scalar_select %p123, %s124, %s125
      %p129 = pneg %p123
      %p130 = scmp.eq.s32.totalorder %s15, 1
      %p131 = por %p129, %p130
      %p132 = scmp.ne.s32.totalorder %s124, %s127
      %p133 = scmp.eq.s32.totalorder %s15, 0
      %p134 = por %p132, %p133
      %p135 = scmp.ne.s32.totalorder %s124, %s127
      %p136 = scmp.eq.s32.totalorder %s20, 1
      %p137 = por %p135, %p136
      %p138 = scmp.ne.s32.totalorder %s127, %s128
      %p139 = scmp.eq.s32.totalorder %s20, 0
      %p140 = por %p138, %p139
      %p141 = scmp.ne.s32.totalorder %s127, %s128
      %p142 = scmp.eq.s32.totalorder %s21, 1
      %p143 = por %p141, %p142
      %p145 = scmp.ne.s32.totalorder %s128, %s144
      %p146 = scmp.eq.s32.totalorder %s21, 0
      %p147 = por %p145, %p146
      %s148 = ssub.s32 %s15, %s22
      %p149 = scmp.eq.s32.totalorder %s148, 0
      %s151 = sadd.s32 %s150, 1
      %s152 = scalar_select %p149, %s150, %s151
      %p155 = pneg %p149
      %p156 = scmp.eq.s32.totalorder %s15, 1
      %p157 = por %p155, %p156
      %p158 = scmp.ne.s32.totalorder %s150, %s153
      %p159 = scmp.eq.s32.totalorder %s15, 0
      %p160 = por %p158, %p159
      %p161 = scmp.ne.s32.totalorder %s150, %s153
      %p162 = scmp.eq.s32.totalorder %s20, 1
      %p163 = por %p161, %p162
      %p164 = scmp.ne.s32.totalorder %s153, %s154
      %p165 = scmp.eq.s32.totalorder %s20, 0
      %p166 = por %p164, %p165
      %p167 = scmp.ne.s32.totalorder %s153, %s154
      %p168 = scmp.eq.s32.totalorder %s21, 1
      %p169 = por %p167, %p168
      %p171 = scmp.ne.s32.totalorder %s154, %s170
      %p172 = scmp.eq.s32.totalorder %s21, 0
      %p173 = por %p171, %p172
      %p174 = scmp.le.s32.totalorder 1, %s15
      %p175 = scmp.lt.s32.totalorder %s15, 3
      %p176 = pnand %p174, %p175
      %p177 = pneg %p176
      // Predicated region
      $region9: #{multi_head_attention.4} parent=5 // pred_check
        _
      $region10: #{multi_head_attention.4} parent=5 // pred_check_branch
        %179 = sbr.rel (%p176) target = $region12
      $region11: #{multi_head_attention.4} parent=5 // pred_region
        %s180 = ssub.s32 %s15, 1
        // Predicated region
        $region13: #{multi_head_attention.4} parent=11 // pred_check
          %p181 = pneg %p114
        $region14: #{multi_head_attention.4} parent=11 // pred_check_branch
          %183 = sbr.rel (%p181) target = $region16
        $region15: #{multi_head_attention.4} parent=11 // pred_region
          _
        $region16: #{multi_head_attention.4} parent=11 // pred_fallthru
          _
      $region12: #{multi_head_attention.4} parent=5 // pred_fallthru
        _
      %p184 = scmp.lt.s32.totalorder %s15, 2
      // Predicated region
      $region17: #{multi_head_attention.4} parent=5 // pred_check
        %p185 = pneg %p184
      $region18: #{multi_head_attention.4} parent=5 // pred_check_branch
        %187 = sbr.rel (%p185) target = $region20
      $region19: #{multi_head_attention.4} parent=5 // pred_region
        // Predicated region
        $region21: #{multi_head_attention.4} parent=19 // pred_check
          %p188 = pneg %p35
        $region22: #{multi_head_attention.4} parent=19 // pred_check_branch
          %190 = sbr.rel (%p188) target = $region24
        $region23: #{multi_head_attention.4} parent=19 // pred_region
          %s191 = smul.u32 4, %s15
          %p192 = scmp.lt.s32.totalorder %s191, 7
          %s193 = scalar_select %p192, %s191, 7
          %s194 = smul.addr %s193, 4
          %s195 = scalar_lea.vmem %s0, %s194
          %s196 = smul.u32 4, %s15
        $region24: #{multi_head_attention.4} parent=19 // pred_fallthru
          _
        // Predicated region
        $region25: #{multi_head_attention.4} parent=19 // pred_check
          %p197 = pneg %p61
        $region26: #{multi_head_attention.4} parent=19 // pred_check_branch
          %199 = sbr.rel (%p197) target = $region28
        $region27: #{multi_head_attention.4} parent=19 // pred_region
          %s200 = smul.u32 4, %s15
          %p201 = scmp.lt.s32.totalorder %s200, 7
          %s202 = scalar_select %p201, %s200, 7
          %s203 = smul.addr %s202, 4
          %s204 = scalar_lea.vmem %s1, %s203
          %s205 = smul.u32 4, %s15
        $region28: #{multi_head_attention.4} parent=19 // pred_fallthru
          _
        // Predicated region
        $region29: #{multi_head_attention.4} parent=19 // pred_check
          %p206 = pneg %p87
        $region30: #{multi_head_attention.4} parent=19 // pred_check_branch
          %208 = sbr.rel (%p206) target = $region32
        $region31: #{multi_head_attention.4} parent=19 // pred_region
          %s209 = smul.u32 4, %s15
          %p210 = scmp.lt.s32.totalorder %s209, 7
          %s211 = scalar_select %p210, %s209, 7
          %s212 = smul.addr %s211, 4
          %s213 = scalar_lea.vmem %s2, %s212
          %s214 = smul.u32 4, %s15
        $region32: #{multi_head_attention.4} parent=19 // pred_fallthru
          _
      $region20: #{multi_head_attention.4} parent=5 // pred_fallthru
        _
      %p215 = scmp.le.s32.totalorder 1, %s15
      %p216 = scmp.lt.s32.totalorder %s15, 3
      %p217 = pnand %p215, %p216
      %p218 = pneg %p217
      // Predicated region
      $region33: #{multi_head_attention.4} parent=5 // pred_check
        _
      $region34: #{multi_head_attention.4} parent=5 // pred_check_branch
        %220 = sbr.rel (%p217) target = $region36
      $region35: #{multi_head_attention.4} parent=5 // pred_region
        %s221 = ssub.s32 %s15, 1
        %s222 = smul.u32 4, %s20
        %p223 = scmp.lt.s32.totalorder %s222, 7
        %s224 = scalar_select %p223, %s222, 7
        %s225 = smul.addr %s224, 4
        %s226 = scalar_lea.vmem %s0, %s225
        %p227 = pneg %p41
        %p228 = pneg %p38
        %s229 = smul.u32 4, %s20
        %p230 = scmp.lt.s32.totalorder %s229, 7
        %s231 = scalar_select %p230, %s229, 7
        %s232 = smul.addr %s231, 4
        %s233 = scalar_lea.vmem %s1, %s232
        %p234 = pneg %p67
        %p235 = pneg %p64
        %s236 = smul.u32 4, %s20
        %p237 = scmp.lt.s32.totalorder %s236, 7
        %s238 = scalar_select %p237, %s236, 7
        %s239 = smul.addr %s238, 4
        %s240 = scalar_lea.vmem %s2, %s239
        %p241 = pneg %p93
        %p242 = pneg %p90
        %p243 = pneg %p114
        %p244 = pneg %p111
        %p245 = pneg %p140
        %p246 = pneg %p137
        %s247 = smul.u32 4, %s20
        %p248 = scmp.lt.s32.totalorder %s247, 7
        %s249 = scalar_select %p248, %s247, 7
        %s250 = smul.addr %s249, 4
        %s251 = scalar_lea.vmem %s4, %s250
        %p252 = pneg %p166
        %p253 = pneg %p163
        %s254 = sand.u32 %s153, 1
        %s255 = scalar_lea.sflag [#allocation3], %s254
        %s256 = sand.u32 %s153, 1
        %s257 = smul.addr %s256, 16
        %s258 = scalar_lea.vmem [#allocation2], %s257
        %s259 = smul.u32 4, %s20
        %p260 = scmp.lt.s32.totalorder %s259, 7
        %s261 = scalar_select %p260, %s259, 7
        %s262 = smul.addr %s261, 4
        %s263 = scalar_lea.vmem %s0, %s262
        %s264 = smul.u32 4, %s20
        %s265 = smul.u32 4, %s20
        %p266 = scmp.lt.s32.totalorder %s265, 7
        %s267 = scalar_select %p266, %s265, 7
        %s268 = smul.addr %s267, 4
        %s269 = scalar_lea.vmem %s1, %s268
        %s270 = smul.u32 4, %s20
        %s271 = smul.u32 4, %s20
        %p272 = scmp.lt.s32.totalorder %s271, 7
        %s273 = scalar_select %p272, %s271, 7
        %s274 = smul.addr %s273, 4
        %s275 = scalar_lea.vmem %s2, %s274
        %s276 = smul.u32 4, %s20
        %s277 = smul.u32 4, %s20
        %p278 = scmp.lt.s32.totalorder %s277, 7
        %s279 = scalar_select %p278, %s277, 7
        %s280 = smul.addr %s279, 4
        %s281 = scalar_lea.vmem %s4, %s280
        %s282 = smul.u32 4, %s20
        %s283 = smul.u32 4, %s20
        %v285 = vld [vmem:[%s263] sm:$0xf]
        %v286 = vld [vmem:[%s263 + $0x4] sm:$0xf]
        %v287 = vld [vmem:[%s263 + $0x8] sm:$0xf]
        %v288 = vld [vmem:[%s263 + $0xc] sm:$0xf]
        %v289 = vld [vmem:[%s269] sm:$0xf]
        %v290 = vld [vmem:[%s269 + $0x4] sm:$0xf]
        %v291 = vld [vmem:[%s269 + $0x8] sm:$0xf]
        %v292 = vld [vmem:[%s269 + $0xc] sm:$0xf]
        %vm293 = vcmask 64512
        %v295 = vsel %vm293, %v285, 0
        %v298 = vsel %vm293, %v289, 0
        %300 = vmatprep.subr.bf16.mxu0 0
        %301 = vmatpush1.bf16.xpose.msra.mxu0 %v298
        %302 = vmatprep.subr.bf16.mxu0 0
        %303 = vmatpush1.bf16.xpose.msra.mxu0 0
        %304 = vmatprep.subr.bf16.mxu0 0
        %305 = vmatpush1.bf16.xpose.msra.mxu0 0
        %306 = vmatprep.subr.bf16.mxu0 0
        %307 = vmatpush1.bf16.xpose.msra.mxu0 0
        %308 = vmatprep.subr.bf16.mxu0 0
        %309 = vmatpush1.bf16.xpose.msra.mxu0 0
        %310 = vmatprep.subr.bf16.mxu0 0
        %311 = vmatpush1.bf16.xpose.msra.mxu0 0
        %312 = vmatprep.subr.bf16.mxu0 0
        %313 = vmatpush1.bf16.xpose.msra.mxu0 0
        %314 = vmatprep.subr.bf16.mxu0 0
        %315 = vmatpush1.bf16.xpose.msra.mxu0 0
        %316 = vmatprep.subr.bf16.mxu0 0
        %317 = vmatpush1.bf16.xpose.msra.mxu0 0
        %318 = vmatprep.subr.bf16.mxu0 0
        %319 = vmatpush1.bf16.xpose.msra.mxu0 0
        %320 = vmatprep.subr.bf16.mxu0 0
        %321 = vmatpush1.bf16.xpose.msra.mxu0 0
        %322 = vmatprep.subr.bf16.mxu0 0
        %323 = vmatpush1.bf16.xpose.msra.mxu0 0
        %324 = vmatprep.subr.bf16.mxu0 0
        %325 = vmatpush1.bf16.xpose.msra.mxu0 0
        %326 = vmatprep.subr.bf16.mxu0 0
        %327 = vmatpush1.bf16.xpose.msra.mxu0 0
        %328 = vmatprep.subr.bf16.mxu0 0
        %329 = vmatpush1.bf16.xpose.msra.mxu0 0
        %330 = vmatprep.subr.bf16.mxu0 0
        %331 = vmatpush1.bf16.xpose.msra.mxu0 0
        %332 = vmatprep.mubr.bf16.mxu0 0
        %333 = vmatmul.mubr.bf16.gmra.mrb[0].mxu0 %v295
        %v334 = vpop.f32.mrb[0].mxu0
        %v335 = vadd.f32 0.0, %v334
        %v336 = vpop.f32.mrb[0].mxu0
        %v337 = vpop.f32.mrb[0].mxu0
        %v338 = vpop.f32.mrb[0].mxu0
        %339 = vdwg.mxu0
        %v341 = vsel %vm293, %v286, 0
        %v344 = vsel %vm293, %v290, 0
        %346 = vmatprep.subr.bf16.mxu0 0
        %347 = vmatpush1.bf16.xpose.msra.mxu0 %v344
        %348 = vmatprep.subr.bf16.mxu0 0
        %349 = vmatpush1.bf16.xpose.msra.mxu0 0
        %350 = vmatprep.subr.bf16.mxu0 0
        %351 = vmatpush1.bf16.xpose.msra.mxu0 0
        %352 = vmatprep.subr.bf16.mxu0 0
        %353 = vmatpush1.bf16.xpose.msra.mxu0 0
        %354 = vmatprep.subr.bf16.mxu0 0
        %355 = vmatpush1.bf16.xpose.msra.mxu0 0
        %356 = vmatprep.subr.bf16.mxu0 0
        %357 = vmatpush1.bf16.xpose.msra.mxu0 0
        %358 = vmatprep.subr.bf16.mxu0 0
        %359 = vmatpush1.bf16.xpose.msra.mxu0 0
        %360 = vmatprep.subr.bf16.mxu0 0
        %361 = vmatpush1.bf16.xpose.msra.mxu0 0
        %362 = vmatprep.subr.bf16.mxu0 0
        %363 = vmatpush1.bf16.xpose.msra.mxu0 0
        %364 = vmatprep.subr.bf16.mxu0 0
        %365 = vmatpush1.bf16.xpose.msra.mxu0 0
        %366 = vmatprep.subr.bf16.mxu0 0
        %367 = vmatpush1.bf16.xpose.msra.mxu0 0
        %368 = vmatprep.subr.bf16.mxu0 0
        %369 = vmatpush1.bf16.xpose.msra.mxu0 0
        %370 = vmatprep.subr.bf16.mxu0 0
        %371 = vmatpush1.bf16.xpose.msra.mxu0 0
        %372 = vmatprep.subr.bf16.mxu0 0
        %373 = vmatpush1.bf16.xpose.msra.mxu0 0
        %374 = vmatprep.subr.bf16.mxu0 0
        %375 = vmatpush1.bf16.xpose.msra.mxu0 0
        %376 = vmatprep.subr.bf16.mxu0 0
        %377 = vmatpush1.bf16.xpose.msra.mxu0 0
        %378 = vmatprep.mubr.bf16.mxu0 0
        %379 = vmatmul.mubr.bf16.gmra.mrb[0].mxu0 %v341
        %v380 = vpop.f32.mrb[0].mxu0
        %v381 = vadd.f32 0.0, %v380
        %v382 = vpop.f32.mrb[0].mxu0
        %v383 = vpop.f32.mrb[0].mxu0
        %v384 = vpop.f32.mrb[0].mxu0
        %385 = vdwg.mxu0
        %v387 = vsel %vm293, %v287, 0
        %v390 = vsel %vm293, %v291, 0
        %392 = vmatprep.subr.bf16.mxu0 0
        %393 = vmatpush1.bf16.xpose.msra.mxu0 %v390
        %394 = vmatprep.subr.bf16.mxu0 0
        %395 = vmatpush1.bf16.xpose.msra.mxu0 0
        %396 = vmatprep.subr.bf16.mxu0 0
        %397 = vmatpush1.bf16.xpose.msra.mxu0 0
        %398 = vmatprep.subr.bf16.mxu0 0
        %399 = vmatpush1.bf16.xpose.msra.mxu0 0
        %400 = vmatprep.subr.bf16.mxu0 0
        %401 = vmatpush1.bf16.xpose.msra.mxu0 0
        %402 = vmatprep.subr.bf16.mxu0 0
        %403 = vmatpush1.bf16.xpose.msra.mxu0 0
        %404 = vmatprep.subr.bf16.mxu0 0
        %405 = vmatpush1.bf16.xpose.msra.mxu0 0
        %406 = vmatprep.subr.bf16.mxu0 0
        %407 = vmatpush1.bf16.xpose.msra.mxu0 0
        %408 = vmatprep.subr.bf16.mxu0 0
        %409 = vmatpush1.bf16.xpose.msra.mxu0 0
        %410 = vmatprep.subr.bf16.mxu0 0
        %411 = vmatpush1.bf16.xpose.msra.mxu0 0
        %412 = vmatprep.subr.bf16.mxu0 0
        %413 = vmatpush1.bf16.xpose.msra.mxu0 0
        %414 = vmatprep.subr.bf16.mxu0 0
        %415 = vmatpush1.bf16.xpose.msra.mxu0 0
        %416 = vmatprep.subr.bf16.mxu0 0
        %417 = vmatpush1.bf16.xpose.msra.mxu0 0
        %418 = vmatprep.subr.bf16.mxu0 0
        %419 = vmatpush1.bf16.xpose.msra.mxu0 0
        %420 = vmatprep.subr.bf16.mxu0 0
        %421 = vmatpush1.bf16.xpose.msra.mxu0 0
        %422 = vmatprep.subr.bf16.mxu0 0
        %423 = vmatpush1.bf16.xpose.msra.mxu0 0
        %424 = vmatprep.mubr.bf16.mxu0 0
        %425 = vmatmul.mubr.bf16.gmra.mrb[0].mxu0 %v387
        %v426 = vpop.f32.mrb[0].mxu0
        %v427 = vadd.f32 0.0, %v426
        %v428 = vpop.f32.mrb[0].mxu0
        %v429 = vpop.f32.mrb[0].mxu0
        %v430 = vpop.f32.mrb[0].mxu0
        %431 = vdwg.mxu0
        %v433 = vsel %vm293, %v288, 0
        %v436 = vsel %vm293, %v292, 0
        %438 = vmatprep.subr.bf16.mxu0 0
        %439 = vmatpush1.bf16.xpose.msra.mxu0 %v436
        %440 = vmatprep.subr.bf16.mxu0 0
        %441 = vmatpush1.bf16.xpose.msra.mxu0 0
        %442 = vmatprep.subr.bf16.mxu0 0
        %443 = vmatpush1.bf16.xpose.msra.mxu0 0
        %444 = vmatprep.subr.bf16.mxu0 0
        %445 = vmatpush1.bf16.xpose.msra.mxu0 0
        %446 = vmatprep.subr.bf16.mxu0 0
        %447 = vmatpush1.bf16.xpose.msra.mxu0 0
        %448 = vmatprep.subr.bf16.mxu0 0
        %449 = vmatpush1.bf16.xpose.msra.mxu0 0
        %450 = vmatprep.subr.bf16.mxu0 0
        %451 = vmatpush1.bf16.xpose.msra.mxu0 0
        %452 = vmatprep.subr.bf16.mxu0 0
        %453 = vmatpush1.bf16.xpose.msra.mxu0 0
        %454 = vmatprep.subr.bf16.mxu0 0
        %455 = vmatpush1.bf16.xpose.msra.mxu0 0
        %456 = vmatprep.subr.bf16.mxu0 0
        %457 = vmatpush1.bf16.xpose.msra.mxu0 0
        %458 = vmatprep.subr.bf16.mxu0 0
        %459 = vmatpush1.bf16.xpose.msra.mxu0 0
        %460 = vmatprep.subr.bf16.mxu0 0
        %461 = vmatpush1.bf16.xpose.msra.mxu0 0
        %462 = vmatprep.subr.bf16.mxu0 0
        %463 = vmatpush1.bf16.xpose.msra.mxu0 0
        %464 = vmatprep.subr.bf16.mxu0 0
        %465 = vmatpush1.bf16.xpose.msra.mxu0 0
        %466 = vmatprep.subr.bf16.mxu0 0
        %467 = vmatpush1.bf16.xpose.msra.mxu0 0
        %468 = vmatprep.subr.bf16.mxu0 0
        %469 = vmatpush1.bf16.xpose.msra.mxu0 0
        %470 = vmatprep.mubr.bf16.mxu0 0
        %471 = vmatmul.mubr.bf16.gmra.mrb[0].mxu0 %v433
        %v472 = vpop.f32.mrb[0].mxu0
        %v473 = vadd.f32 0.0, %v472
        %v474 = vpop.f32.mrb[0].mxu0
        %v475 = vpop.f32.mrb[0].mxu0
        %v476 = vpop.f32.mrb[0].mxu0
        %477 = vdwg.mxu0
        %v478 = vmul.f32 %v335, 0.70710677
        %v479 = vmul.f32 %v381, 0.70710677
        %v480 = vmul.f32 %v427, 0.70710677
        %v481 = vmul.f32 %v473, 0.70710677
        %v482 = vld [vmem:[%s3] sm:$0xff]
        %v483 = vld [vmem:[%s3 + $0x8] sm:$0xff]
        %v484 = vadd.f32 %v478, %v482
        %v485 = vadd.f32 %v479, %v483
        %v486 = vadd.f32 %v480, %v482
        %v487 = vadd.f32 %v481, %v483
        %v488 = vsel %vm293, %v484, -inf
        %489 = vmax.xlane.f32.xlu0 %v488
        %v490 = vpop.xlane.xlu0 %489
        %v491 = vsel %vm293, %v485, -inf
        %492 = vmax.xlane.f32.xlu0 %v491
        %v493 = vpop.xlane.xlu0 %492
        %v494 = vsel %vm293, %v486, -inf
        %495 = vmax.xlane.f32.xlu0 %v494
        %v496 = vpop.xlane.xlu0 %495
        %v497 = vsel %vm293, %v487, -inf
        %498 = vmax.xlane.f32.xlu0 %v497
        %v499 = vpop.xlane.xlu0 %498
        %v500 = vsub.f32 %v484, %v490
        %v501 = vsub.f32 %v485, %v493
        %v502 = vsub.f32 %v486, %v496
        %v503 = vsub.f32 %v487, %v499
        %v504 = vmul.f32 %v500, 1.442695
        %v505 = vpow.pop %v504
        %v506 = vmul.f32 %v501, 1.442695
        %v507 = vpow.pop %v506
        %v508 = vmul.f32 %v502, 1.442695
        %v509 = vpow.pop %v508
        %v510 = vmul.f32 %v503, 1.442695
        %v511 = vpow.pop %v510
        %v512 = vsel %vm293, %v505, 0.0
        %513 = vadd.xlane.f32.xlu0 %v512
        %v514 = vpop.xlane.xlu0 %513
        %v515 = vsel %vm293, %v507, 0.0
        %516 = vadd.xlane.f32.xlu0 %v515
        %v517 = vpop.xlane.xlu0 %516
        %v518 = vsel %vm293, %v509, 0.0
        %519 = vadd.xlane.f32.xlu0 %v518
        %v520 = vpop.xlane.xlu0 %519
        %v521 = vsel %vm293, %v511, 0.0
        %522 = vadd.xlane.f32.xlu0 %v521
        %v523 = vpop.xlane.xlu0 %522
        %v524 = vrcp.pop %v514
        %v525 = vrcp.pop %v517
        %v526 = vrcp.pop %v520
        %v527 = vrcp.pop %v523
        %v528 = vmul.f32 %v505, %v524
        %v529 = vmul.f32 %v507, %v525
        %v530 = vmul.f32 %v509, %v526
        %v531 = vmul.f32 %v511, %v527
        %v532 = vpack.c.bf16 %v528, %v528
        %v533 = vpack.c.bf16 %v529, %v529
        %v534 = vpack.c.bf16 %v530, %v530
        %v535 = vpack.c.bf16 %v531, %v531
        %v536 = vld [vmem:[%s275] sm:$0xf]
        %v537 = vld [vmem:[%s275 + $0x4] sm:$0xf]
        %v538 = vld [vmem:[%s275 + $0x8] sm:$0xf]
        %v539 = vld [vmem:[%s275 + $0xc] sm:$0xf]
        %v541 = vsel %vm293, %v532, 0
        %vm543 = vcmask 1043456
        %v545 = vsel %vm543, %v536, 0
        %547 = vmatprep.subr.bf16.mxu0 0
        %548 = vmatpush1.bf16.msra.mxu0 %v545
        %549 = vmatprep.subr.bf16.mxu0 0
        %550 = vmatpush1.bf16.msra.mxu0 0
        %551 = vmatprep.subr.bf16.mxu0 0
        %552 = vmatpush1.bf16.msra.mxu0 0
        %553 = vmatprep.subr.bf16.mxu0 0
        %554 = vmatpush1.bf16.msra.mxu0 0
        %555 = vmatprep.subr.bf16.mxu0 0
        %556 = vmatpush1.bf16.msra.mxu0 0
        %557 = vmatprep.subr.bf16.mxu0 0
        %558 = vmatpush1.bf16.msra.mxu0 0
        %559 = vmatprep.subr.bf16.mxu0 0
        %560 = vmatpush1.bf16.msra.mxu0 0
        %561 = vmatprep.subr.bf16.mxu0 0
        %562 = vmatpush1.bf16.msra.mxu0 0
        %563 = vmatprep.subr.bf16.mxu0 0
        %564 = vmatpush1.bf16.msra.mxu0 0
        %565 = vmatprep.subr.bf16.mxu0 0
        %566 = vmatpush1.bf16.msra.mxu0 0
        %567 = vmatprep.subr.bf16.mxu0 0
        %568 = vmatpush1.bf16.msra.mxu0 0
        %569 = vmatprep.subr.bf16.mxu0 0
        %570 = vmatpush1.bf16.msra.mxu0 0
        %571 = vmatprep.subr.bf16.mxu0 0
        %572 = vmatpush1.bf16.msra.mxu0 0
        %573 = vmatprep.subr.bf16.mxu0 0
        %574 = vmatpush1.bf16.msra.mxu0 0
        %575 = vmatprep.subr.bf16.mxu0 0
        %576 = vmatpush1.bf16.msra.mxu0 0
        %577 = vmatprep.subr.bf16.mxu0 0
        %578 = vmatpush1.bf16.msra.mxu0 0
        %579 = vmatprep.mubr.bf16.mxu0 0
        %580 = vmatmul.mubr.bf16.gmra.mrb[0].mxu0 %v541
        %v581 = vpop.f32.mrb[0].mxu0
        %v582 = vadd.f32 0.0, %v581
        %v583 = vpop.f32.mrb[0].mxu0
        %v584 = vpop.f32.mrb[0].mxu0
        %v585 = vpop.f32.mrb[0].mxu0
        %586 = vdwg.mxu0
        %v588 = vsel %vm293, %v533, 0
        %v591 = vsel %vm543, %v537, 0
        %593 = vmatprep.subr.bf16.mxu0 0
        %594 = vmatpush1.bf16.msra.mxu0 %v591
        %595 = vmatprep.subr.bf16.mxu0 0
        %596 = vmatpush1.bf16.msra.mxu0 0
        %597 = vmatprep.subr.bf16.mxu0 0
        %598 = vmatpush1.bf16.msra.mxu0 0
        %599 = vmatprep.subr.bf16.mxu0 0
        %600 = vmatpush1.bf16.msra.mxu0 0
        %601 = vmatprep.subr.bf16.mxu0 0
        %602 = vmatpush1.bf16.msra.mxu0 0
        %603 = vmatprep.subr.bf16.mxu0 0
        %604 = vmatpush1.bf16.msra.mxu0 0
        %605 = vmatprep.subr.bf16.mxu0 0
        %606 = vmatpush1.bf16.msra.mxu0 0
        %607 = vmatprep.subr.bf16.mxu0 0
        %608 = vmatpush1.bf16.msra.mxu0 0
        %609 = vmatprep.subr.bf16.mxu0 0
        %610 = vmatpush1.bf16.msra.mxu0 0
        %611 = vmatprep.subr.bf16.mxu0 0
        %612 = vmatpush1.bf16.msra.mxu0 0
        %613 = vmatprep.subr.bf16.mxu0 0
        %614 = vmatpush1.bf16.msra.mxu0 0
        %615 = vmatprep.subr.bf16.mxu0 0
        %616 = vmatpush1.bf16.msra.mxu0 0
        %617 = vmatprep.subr.bf16.mxu0 0
        %618 = vmatpush1.bf16.msra.mxu0 0
        %619 = vmatprep.subr.bf16.mxu0 0
        %620 = vmatpush1.bf16.msra.mxu0 0
        %621 = vmatprep.subr.bf16.mxu0 0
        %622 = vmatpush1.bf16.msra.mxu0 0
        %623 = vmatprep.subr.bf16.mxu0 0
        %624 = vmatpush1.bf16.msra.mxu0 0
        %625 = vmatprep.mubr.bf16.mxu0 0
        %626 = vmatmul.mubr.bf16.gmra.mrb[0].mxu0 %v588
        %v627 = vpop.f32.mrb[0].mxu0
        %v628 = vadd.f32 0.0, %v627
        %v629 = vpop.f32.mrb[0].mxu0
        %v630 = vpop.f32.mrb[0].mxu0
        %v631 = vpop.f32.mrb[0].mxu0
        %632 = vdwg.mxu0
        %v634 = vsel %vm293, %v534, 0
        %v637 = vsel %vm543, %v538, 0
        %639 = vmatprep.subr.bf16.mxu0 0
        %640 = vmatpush1.bf16.msra.mxu0 %v637
        %641 = vmatprep.subr.bf16.mxu0 0
        %642 = vmatpush1.bf16.msra.mxu0 0
        %643 = vmatprep.subr.bf16.mxu0 0
        %644 = vmatpush1.bf16.msra.mxu0 0
        %645 = vmatprep.subr.bf16.mxu0 0
        %646 = vmatpush1.bf16.msra.mxu0 0
        %647 = vmatprep.subr.bf16.mxu0 0
        %648 = vmatpush1.bf16.msra.mxu0 0
        %649 = vmatprep.subr.bf16.mxu0 0
        %650 = vmatpush1.bf16.msra.mxu0 0
        %651 = vmatprep.subr.bf16.mxu0 0
        %652 = vmatpush1.bf16.msra.mxu0 0
        %653 = vmatprep.subr.bf16.mxu0 0
        %654 = vmatpush1.bf16.msra.mxu0 0
        %655 = vmatprep.subr.bf16.mxu0 0
        %656 = vmatpush1.bf16.msra.mxu0 0
        %657 = vmatprep.subr.bf16.mxu0 0
        %658 = vmatpush1.bf16.msra.mxu0 0
        %659 = vmatprep.subr.bf16.mxu0 0
        %660 = vmatpush1.bf16.msra.mxu0 0
        %661 = vmatprep.subr.bf16.mxu0 0
        %662 = vmatpush1.bf16.msra.mxu0 0
        %663 = vmatprep.subr.bf16.mxu0 0
        %664 = vmatpush1.bf16.msra.mxu0 0
        %665 = vmatprep.subr.bf16.mxu0 0
        %666 = vmatpush1.bf16.msra.mxu0 0
        %667 = vmatprep.subr.bf16.mxu0 0
        %668 = vmatpush1.bf16.msra.mxu0 0
        %669 = vmatprep.subr.bf16.mxu0 0
        %670 = vmatpush1.bf16.msra.mxu0 0
        %671 = vmatprep.mubr.bf16.mxu0 0
        %672 = vmatmul.mubr.bf16.gmra.mrb[0].mxu0 %v634
        %v673 = vpop.f32.mrb[0].mxu0
        %v674 = vadd.f32 0.0, %v673
        %v675 = vpop.f32.mrb[0].mxu0
        %v676 = vpop.f32.mrb[0].mxu0
        %v677 = vpop.f32.mrb[0].mxu0
        %678 = vdwg.mxu0
        %v680 = vsel %vm293, %v535, 0
        %v683 = vsel %vm543, %v539, 0
        %685 = vmatprep.subr.bf16.mxu0 0
        %686 = vmatpush1.bf16.msra.mxu0 %v683
        %687 = vmatprep.subr.bf16.mxu0 0
        %688 = vmatpush1.bf16.msra.mxu0 0
        %689 = vmatprep.subr.bf16.mxu0 0
        %690 = vmatpush1.bf16.msra.mxu0 0
        %691 = vmatprep.subr.bf16.mxu0 0
        %692 = vmatpush1.bf16.msra.mxu0 0
        %693 = vmatprep.subr.bf16.mxu0 0
        %694 = vmatpush1.bf16.msra.mxu0 0
        %695 = vmatprep.subr.bf16.mxu0 0
        %696 = vmatpush1.bf16.msra.mxu0 0
        %697 = vmatprep.subr.bf16.mxu0 0
        %698 = vmatpush1.bf16.msra.mxu0 0
        %699 = vmatprep.subr.bf16.mxu0 0
        %700 = vmatpush1.bf16.msra.mxu0 0
        %701 = vmatprep.subr.bf16.mxu0 0
        %702 = vmatpush1.bf16.msra.mxu0 0
        %703 = vmatprep.subr.bf16.mxu0 0
        %704 = vmatpush1.bf16.msra.mxu0 0
        %705 = vmatprep.subr.bf16.mxu0 0
        %706 = vmatpush1.bf16.msra.mxu0 0
        %707 = vmatprep.subr.bf16.mxu0 0
        %708 = vmatpush1.bf16.msra.mxu0 0
        %709 = vmatprep.subr.bf16.mxu0 0
        %710 = vmatpush1.bf16.msra.mxu0 0
        %711 = vmatprep.subr.bf16.mxu0 0
        %712 = vmatpush1.bf16.msra.mxu0 0
        %713 = vmatprep.subr.bf16.mxu0 0
        %714 = vmatpush1.bf16.msra.mxu0 0
        %715 = vmatprep.subr.bf16.mxu0 0
        %716 = vmatpush1.bf16.msra.mxu0 0
        %717 = vmatprep.mubr.bf16.mxu0 0
        %718 = vmatmul.mubr.bf16.gmra.mrb[0].mxu0 %v680
        %v719 = vpop.f32.mrb[0].mxu0
        %v720 = vadd.f32 0.0, %v719
        %v721 = vpop.f32.mrb[0].mxu0
        %v722 = vpop.f32.mrb[0].mxu0
        %v723 = vpop.f32.mrb[0].mxu0
        %724 = vdwg.mxu0
        %v725 = vpack.c.bf16 %v582, %v582
        %v726 = vpack.c.bf16 %v628, %v628
        %v727 = vpack.c.bf16 %v674, %v674
        %v728 = vpack.c.bf16 %v720, %v720
        %vm729 = vcmask 60416
        %730 = vst.msk [vmem:[%s281] sm:$0xf] %vm729, %v725
        %731 = vst.msk [vmem:[%s281 + $0x4] sm:$0xf] %vm729, %v726
        %732 = vst.msk [vmem:[%s281 + $0x8] sm:$0xf] %vm729, %v727
        %733 = vst.msk [vmem:[%s281 + $0xc] sm:$0xf] %vm729, %v728
        %734 = vst.msk [vmem:[%s258] sm:$0xf] %vm729, %v532
        %735 = vst.msk [vmem:[%s258 + $0x4] sm:$0xf] %vm729, %v533
        %736 = vst.msk [vmem:[%s258 + $0x8] sm:$0xf] %vm729, %v534
        %737 = vst.msk [vmem:[%s258 + $0xc] sm:$0xf] %vm729, %v535
        %s738 = smul.u32 4, %s20
        %p739 = scmp.lt.s32.totalorder %s738, 7
        %s740 = scalar_select %p739, %s738, 7
        %s741 = smul.addr %s740, 4
        %s742 = scalar_lea.vmem %s4, %s741
        %s743 = sand.u32 %s153, 1
        %s744 = scalar_lea.sflag [#allocation3], %s743
        %s745 = sand.u32 %s153, 1
        %s746 = smul.addr %s745, 16
        %s747 = scalar_lea.vmem [#allocation2], %s746
        // Predicated region
        $region37: #{multi_head_attention.4} parent=35 // pred_check
          %p748 = pneg %p137
        $region38: #{multi_head_attention.4} parent=35 // pred_check_branch
          %750 = sbr.rel (%p748) target = $region40
        $region39: #{multi_head_attention.4} parent=35 // pred_region
          %s751 = smul.u32 4, %s20
        $region40: #{multi_head_attention.4} parent=35 // pred_fallthru
          _
        // Predicated region
        $region41: #{multi_head_attention.4} parent=35 // pred_check
          %p752 = pneg %p163
        $region42: #{multi_head_attention.4} parent=35 // pred_check_branch
          %754 = sbr.rel (%p752) target = $region44
        $region43: #{multi_head_attention.4} parent=35 // pred_region
          %s755 = smul.u32 4, %s20
          %s757 = ssub.s32 256, 256
          %758 = vsyncadd %s744, %s757
          %s759 = smul.addr %s755, 64
          %s760 = scalar_lea.hbm %s5, %s759
          %s761 = sshll.u32 %s747, 4
          %s762 = int_to_ptr.vmem [resolvable:$true] %s761
          %767 = dma.vmem_to_hbm [thread:$0]  %s762, 256, %s760, %s744, 64, 64, 4
        $region44: #{multi_head_attention.4} parent=35 // pred_fallthru
          _
      $region36: #{multi_head_attention.4} parent=5 // pred_fallthru
        _
      %p768 = scmp.le.s32.totalorder 2, %s15
      // Predicated region
      $region45: #{multi_head_attention.4} parent=5 // pred_check
        %p769 = pneg %p768
      $region46: #{multi_head_attention.4} parent=5 // pred_check_branch
        %771 = sbr.rel (%p769) target = $region48
      $region47: #{multi_head_attention.4} parent=5 // pred_region
        %s772 = ssub.s32 %s15, 2
        // Predicated region
        $region49: #{multi_head_attention.4} parent=47 // pred_check
          %p773 = pneg %p143
        $region50: #{multi_head_attention.4} parent=47 // pred_check_branch
          %775 = sbr.rel (%p773) target = $region52
        $region51: #{multi_head_attention.4} parent=47 // pred_region
          %s776 = smul.u32 4, %s21
          %p777 = scmp.lt.s32.totalorder %s776, 7
          %s778 = scalar_select %p777, %s776, 7
          %s779 = smul.addr %s778, 4
          %s780 = scalar_lea.vmem %s4, %s779
        $region52: #{multi_head_attention.4} parent=47 // pred_fallthru
          _
        // Predicated region
        $region53: #{multi_head_attention.4} parent=47 // pred_check
          %p781 = pneg %p169
        $region54: #{multi_head_attention.4} parent=47 // pred_check_branch
          %783 = sbr.rel (%p781) target = $region56
        $region55: #{multi_head_attention.4} parent=47 // pred_region
          %s784 = sand.u32 %s154, 1
          %s785 = scalar_lea.sflag [#allocation3], %s784
          %s786 = sand.u32 %s154, 1
          %s787 = smul.addr %s786, 16
          %s788 = scalar_lea.vmem [#allocation2], %s787
          %789 = dma.done %s785, 256
        $region56: #{multi_head_attention.4} parent=47 // pred_fallthru
          _
      $region48: #{multi_head_attention.4} parent=5 // pred_fallthru
        _
    $region6: #{multi_head_attention.4} parent=1 // loop_footer
      %s19 = sadd.s32 1, %s15
    $region7: #{multi_head_attention.4} parent=1 // loop_footer_branch
      %14 = sbr.rel target = $region3
    $region8: #{multi_head_attention.4} parent=1 // loop_exit
      _
    %790 = vsyncpa [#allocation3], 1
    %s791 = scalar_lea.sflag [#allocation3], 1
    %792 = vsyncpa %s791, 1

// kernel: multi_head_attention.5
$region0: #{multi_head_attention.5}
  #allocation0 [shape = 'u32[]', space=smem, size = 0x4, offset = 0x4, fixed_abs, tag = 'smem constant byte address 0x4 - core index']
  #allocation1 [shape = 'u32[144,128]{1,0:T(1,128)}', space=vmem, size = 0x12000, scoped, tag = 'internal scratch']
  #allocation2 [shape = 'f32[16,32]{1,0:T(8,128)}', space=vmem, size = 0x2000, scoped, tag = 'scratch operand']
  %s0 = inlined_call_operand.vmem [shape: bf16[16,32], index: 0, kind: input, shape index: {}]
  %s1 = inlined_call_operand.vmem [shape: bf16[32,32], index: 1, kind: input, shape index: {}]
  %s2 = inlined_call_operand.vmem [shape: f32[1,32], index: 2, kind: input, shape index: {}]
  %s3 = inlined_call_operand.vmem [shape: f32[16,32], index: 3, kind: input, shape index: {}]
  %s4 = inlined_call_operand.vmem [shape: f32[1,32], index: 4, kind: input, shape index: {}]
  %s5 = inlined_call_operand.vmem [shape: f32[1,32], index: 5, kind: input, shape index: {}]
  %s6 = inlined_call_operand.hbm [shape: f32[16,32], index: 6, kind: output, shape index: {}]
  %s7 = sld [smem:[#allocation0]]
  $region42: #{multi_head_attention.5} parent=0
    _
  %s9 = ssub.s32 1, %s7
  %s10 = scalar_select 0, %s9, %s7
  $region1: #{multi_head_attention.5} parent=0
    #allocation3 [shape = 'u8[8192]{0}', space=vmem, size = 0x2000, scoped, tag = 'output window, operand 0, single buffered']
    #allocation4 [shape = 's32[1]{0}', space=sflag, size = 0x4, scoped, tag = 'scoped memory for multi_head_attention.5']
    %11 = vsyncpa [#allocation4], 0
    // Predicated region
    $region2: #{multi_head_attention.5} parent=1 // pred_check
      _
    $region3: #{multi_head_attention.5} parent=1 // pred_check_branch
      %13 = sbr.rel (0) target = $region5
    $region4: #{multi_head_attention.5} parent=1 // pred_region
      _
    $region5: #{multi_head_attention.5} parent=1 // pred_fallthru
      _
    // Predicated region
    $region6: #{multi_head_attention.5} parent=1 // pred_check
      _
    $region7: #{multi_head_attention.5} parent=1 // pred_check_branch
      %15 = sbr.rel (0) target = $region9
    $region8: #{multi_head_attention.5} parent=1 // pred_region
      _
    $region9: #{multi_head_attention.5} parent=1 // pred_fallthru
      _
    // Predicated region
    $region10: #{multi_head_attention.5} parent=1 // pred_check
      _
    $region11: #{multi_head_attention.5} parent=1 // pred_check_branch
      %17 = sbr.rel (0) target = $region13
    $region12: #{multi_head_attention.5} parent=1 // pred_region
      _
    $region13: #{multi_head_attention.5} parent=1 // pred_fallthru
      _
    // Predicated region
    $region14: #{multi_head_attention.5} parent=1 // pred_check
      _
    $region15: #{multi_head_attention.5} parent=1 // pred_check_branch
      %19 = sbr.rel (0) target = $region17
    $region16: #{multi_head_attention.5} parent=1 // pred_region
      _
    $region17: #{multi_head_attention.5} parent=1 // pred_fallthru
      _
    // Predicated region
    $region18: #{multi_head_attention.5} parent=1 // pred_check
      _
    $region19: #{multi_head_attention.5} parent=1 // pred_check_branch
      %21 = sbr.rel (0) target = $region21
    $region20: #{multi_head_attention.5} parent=1 // pred_region
      _
    $region21: #{multi_head_attention.5} parent=1 // pred_fallthru
      _
    // Predicated region
    $region22: #{multi_head_attention.5} parent=1 // pred_check
      _
    $region23: #{multi_head_attention.5} parent=1 // pred_check_branch
      %23 = sbr.rel (0) target = $region25
    $region24: #{multi_head_attention.5} parent=1 // pred_region
      _
    $region25: #{multi_head_attention.5} parent=1 // pred_fallthru
      _
    %p25 = scmp.eq.s32.totalorder 0, 0
    // Predicated region
    $region26: #{multi_head_attention.5} parent=1 // pred_check
      %p26 = pneg %p25
    $region27: #{multi_head_attention.5} parent=1 // pred_check_branch
      %28 = sbr.rel (%p26) target = $region29
    $region28: #{multi_head_attention.5} parent=1 // pred_region
      %vm29 = vcmask 261120
      %30 = vst.msk [vmem:[#allocation2] sm:$0xff] %vm29, 0.0
      %31 = vst.msk [vmem:[#allocation2 + $0x8] sm:$0xff] %vm29, 0.0
    $region29: #{multi_head_attention.5} parent=1 // pred_fallthru
      _
    %v32 = vld [vmem:[#allocation2] sm:$0xff]
    %v33 = vld [vmem:[#allocation2 + $0x8] sm:$0xff]
    %v34 = vld [vmem:[%s0] sm:$0xf]
    %v35 = vld [vmem:[%s0 + $0x4] sm:$0xf]
    %v36 = vld [vmem:[%s1] sm:$0xf]
    %v37 = vld [vmem:[%s1 + $0x4] sm:$0xf]
    %v38 = vld [vmem:[%s1 + $0x8] sm:$0xf]
    %v39 = vld [vmem:[%s1 + $0xc] sm:$0xf]
    %v42 = vunpack.c.l.b16 %v34
    %v43 = vunpack.c.l.b16 %v35
    %v44 = vpack.c.b16 %v43, %v42
    %v49 = vunpack.c.l.b16 %v36
    %v50 = vunpack.c.l.b16 %v37
    %v51 = vunpack.c.l.b16 %v38
    %v52 = vunpack.c.l.b16 %v39
    %v53 = vpack.c.b16 %v50, %v49
    %v54 = vpack.c.b16 %v52, %v51
    %vm57 = vcmask 261120
    %v59 = vsel %vm57, %v44, 0
    %61 = vmatprep.subr.bf16.mxu0 0
    %62 = vmatpush1.bf16.msra.mxu0 %v53
    %63 = vmatprep.subr.bf16.mxu0 0
    %64 = vmatpush1.bf16.msra.mxu0 %v54
    %65 = vmatprep.subr.bf16.mxu0 0
    %66 = vmatpush1.bf16.msra.mxu0 0
    %67 = vmatprep.subr.bf16.mxu0 0
    %68 = vmatpush1.bf16.msra.mxu0 0
    %69 = vmatprep.subr.bf16.mxu0 0
    %70 = vmatpush1.bf16.msra.mxu0 0
    %71 = vmatprep.subr.bf16.mxu0 0
    %72 = vmatpush1.bf16.msra.mxu0 0
    %73 = vmatprep.subr.bf16.mxu0 0
    %74 = vmatpush1.bf16.msra.mxu0 0
    %75 = vmatprep.subr.bf16.mxu0 0
    %76 = vmatpush1.bf16.msra.mxu0 0
    %77 = vmatprep.subr.bf16.mxu0 0
    %78 = vmatpush1.bf16.msra.mxu0 0
    %79 = vmatprep.subr.bf16.mxu0 0
    %80 = vmatpush1.bf16.msra.mxu0 0
    %81 = vmatprep.subr.bf16.mxu0 0
    %82 = vmatpush1.bf16.msra.mxu0 0
    %83 = vmatprep.subr.bf16.mxu0 0
    %84 = vmatpush1.bf16.msra.mxu0 0
    %85 = vmatprep.subr.bf16.mxu0 0
    %86 = vmatpush1.bf16.msra.mxu0 0
    %87 = vmatprep.subr.bf16.mxu0 0
    %88 = vmatpush1.bf16.msra.mxu0 0
    %89 = vmatprep.subr.bf16.mxu0 0
    %90 = vmatpush1.bf16.msra.mxu0 0
    %91 = vmatprep.subr.bf16.mxu0 0
    %92 = vmatpush1.bf16.msra.mxu0 0
    %93 = vmatprep.mubr.bf16.mxu0 0
    %94 = vmatmul.mubr.bf16.gmra.mrb[0].mxu0 %v59
    %v95 = vpop.f32.mrb[0].mxu0
    %v96 = vadd.f32 0.0, %v95
    %v97 = vpop.f32.mrb[0].mxu0
    %v98 = vpop.f32.mrb[0].mxu0
    %v99 = vadd.f32 0.0, %v98
    %v100 = vpop.f32.mrb[0].mxu0
    %101 = vdwg.mxu0
    %v102 = vadd.f32 %v32, %v96
    %v103 = vadd.f32 %v33, %v99
    %104 = vst.msk [vmem:[#allocation2] sm:$0xff] %vm57, %v102
    %105 = vst.msk [vmem:[#allocation2 + $0x8] sm:$0xff] %vm57, %v103
    // Predicated region
    $region30: #{multi_head_attention.5} parent=1 // pred_check
      %p106 = pneg %p25
    $region31: #{multi_head_attention.5} parent=1 // pred_check_branch
      %108 = sbr.rel (%p106) target = $region33
    $region32: #{multi_head_attention.5} parent=1 // pred_region
      %v109 = vld [vmem:[#allocation2] sm:$0xff]
      %v110 = vld [vmem:[#allocation2 + $0x8] sm:$0xff]
      %v111 = vld [vmem:[%s2] sm:$0x1]
      %v113 = vlaneseq
      %v114 = vshrl.u32 %v113, 7
      %v115 = vsub.s32 0, %v114
      %v116 = vrot.slane %v111, %v115
      %v118 = vadd.f32 %v109, %v116
      %v119 = vadd.f32 %v110, %v116
      %v120 = vld [vmem:[%s3] sm:$0xff]
      %v121 = vld [vmem:[%s3 + $0x8] sm:$0xff]
      %v122 = vadd.f32 %v118, %v120
      %v123 = vadd.f32 %v119, %v121
      %v124 = vsel %vm57, %v122, 0.0
      %125 = vadd.xlane.f32.xlu0 %v124
      %v126 = vpop.xlane.xlu0 %125
      %v127 = vsel %vm57, %v123, 0.0
      %128 = vadd.xlane.f32.xlu0 %v127
      %v129 = vpop.xlane.xlu0 %128
      %v130 = vrcp.pop 32.0
      %v131 = vmul.f32 %v126, %v130
      %v132 = vmul.f32 %v129, %v130
      %v133 = vsub.f32 %v122, %v131
      %v134 = vsub.f32 %v123, %v132
      %v135 = vmul.f32 %v133, %v133
      %v136 = vmul.f32 %v134, %v134
      %v137 = vsel %vm57, %v135, 0.0
      %138 = vadd.xlane.f32.xlu0 %v137
      %v139 = vpop.xlane.xlu0 %138
      %v140 = vsel %vm57, %v136, 0.0
      %141 = vadd.xlane.f32.xlu0 %v140
      %v142 = vpop.xlane.xlu0 %141
      %v143 = vmul.f32 %v139, %v130
      %v144 = vmul.f32 %v142, %v130
      %v145 = vadd.f32 %v143, 1e-05
      %v146 = vadd.f32 %v144, 1e-05
      %v147 = vrsqrt.pop %v145
      %v148 = vrsqrt.pop %v146
      %v149 = vmul.f32 %v133, %v147
      %v150 = vmul.f32 %v134, %v148
      %v151 = vld [vmem:[%s4] sm:$0x1]
      %v153 = vlaneseq
      %v154 = vshrl.u32 %v153, 7
      %v155 = vsub.s32 0, %v154
      %v156 = vrot.slane %v151, %v155
      %v158 = vmul.f32 %v149, %v156
      %v159 = vmul.f32 %v150, %v156
      %v160 = vld [vmem:[%s5] sm:$0x1]
      %v162 = vlaneseq
      %v163 = vshrl.u32 %v162, 7
      %v164 = vsub.s32 0, %v163
      %v165 = vrot.slane %v160, %v164
      %v167 = vadd.f32 %v158, %v165
      %v168 = vadd.f32 %v159, %v165
      %169 = vst.msk [vmem:[#allocation3] sm:$0xff] %vm57, %v167
      %170 = vst.msk [vmem:[#allocation3 + $0x8] sm:$0xff] %vm57, %v168
    $region33: #{multi_head_attention.5} parent=1 // pred_fallthru
      _
    // Predicated region
    $region34: #{multi_head_attention.5} parent=1 // pred_check
      _
    $region35: #{multi_head_attention.5} parent=1 // pred_check_branch
      %172 = sbr.rel (0) target = $region37
    $region36: #{multi_head_attention.5} parent=1 // pred_region
      %s174 = ssub.s32 256, 256
      %175 = vsyncadd [#allocation4], %s174
      %s176 = sshll.u32 [#allocation3], 4
      %s177 = int_to_ptr.vmem [resolvable:$true] %s176
      %182 = dma.vmem_to_hbm [thread:$0]  %s177, 256, %s6, [#allocation4], 128, 128, 8
    $region37: #{multi_head_attention.5} parent=1 // pred_fallthru
      _
    // Predicated region
    $region38: #{multi_head_attention.5} parent=1 // pred_check
      _
    $region39: #{multi_head_attention.5} parent=1 // pred_check_branch
      %184 = sbr.rel (0) target = $region41
    $region40: #{multi_head_attention.5} parent=1 // pred_region
      %185 = dma.done [#allocation4], 256
    $region41: #{multi_head_attention.5} parent=1 // pred_fallthru
      _
    %186 = vsyncpa [#allocation4], 1

</llo_original>
